<compile_context>
chip_gen: v7x
topology: tpu7x:2x2x1
jax: 0.10.0
libtpu: 0.0.40
codegen_flags: <defaults>
</compile_context>

<pallas_src>
import functools

import jax
import jax.numpy as jnp
from jax.experimental import pallas as pl
from jax.experimental.pallas import tpu as pltpu

LOG_STD_MIN = -20.0
LOG_STD_MAX = 0.0

HIDDEN_DIMS = (1024, 512, 256, 128, 64)
_LANE = 128
_HEAD_WIDTH = 2 * _LANE          # fused mu|log_std head, lane-aligned halves


def _round_up(x, m):
    return (x + m - 1) // m * m


def _bias_layout():
    """Lane-aligned offsets of each bias segment in the packed bias row."""
    widths = list(HIDDEN_DIMS) + [_HEAD_WIDTH]
    offsets, off = [], 0
    for w in widths:
        offsets.append(off)
        off += _round_up(w, _LANE)
    return tuple(offsets), off


def _actor_kernel(x_ref, w1, w2, w3, w4, w5, wh, b_all, eps_ref, out_ref,
                  *, bias_offsets):
    """One row-tile of the Actor forward; weights stay resident across tiles."""

    def bias(seg, width):
        off = bias_offsets[seg]
        return b_all[:, off:off + width]

    x = x_ref[...]
    # Big layers: bf16 dot inputs (MXU-native), f32 accumulate + f32 epilogue.
    h = jnp.dot(x.astype(jnp.bfloat16), w1[...], preferred_element_type=jnp.float32)
    h = jnp.maximum(h + bias(0, HIDDEN_DIMS[0]), 0.0)
    h = jnp.dot(h.astype(jnp.bfloat16), w2[...], preferred_element_type=jnp.float32)
    h = jnp.maximum(h + bias(1, HIDDEN_DIMS[1]), 0.0)
    h = jnp.dot(h.astype(jnp.bfloat16), w3[...], preferred_element_type=jnp.float32)
    h = jnp.maximum(h + bias(2, HIDDEN_DIMS[2]), 0.0)
    # Small layers + head: keep activations f32 end-to-end (precision; MXU is
    # nowhere near the bottleneck for these tiny matmuls).
    h = jnp.dot(h, w4[...].astype(jnp.float32), preferred_element_type=jnp.float32)
    h = jnp.maximum(h + bias(3, HIDDEN_DIMS[3]), 0.0)
    h = jnp.dot(h, w5[...].astype(jnp.float32), preferred_element_type=jnp.float32)
    h = jnp.maximum(h + bias(4, HIDDEN_DIMS[4]), 0.0)

    # Fused, lane-aligned mu / log_std head: one (64, 256) matmul, split at 128.
    z = jnp.dot(h, wh[...].astype(jnp.float32), preferred_element_type=jnp.float32)
    z = z + bias(5, _HEAD_WIDTH)

    mu = jnp.tanh(z[:, :_LANE])
    log_std = jnp.tanh(z[:, _LANE:])
    log_std = LOG_STD_MIN + 0.5 * (LOG_STD_MAX - LOG_STD_MIN) * (log_std + 1.0)
    std = jnp.exp(log_std)

    # Reparameterized sample of Normal(mu, std): action = mu + std * eps.
    action = mu + std * eps_ref[...]

    # Lane-aligned unmasked stores: [ mu | std | action ] at 128-lane offsets.
    out_ref[:, 0:_LANE] = mu
    out_ref[:, _LANE:2 * _LANE] = std
    out_ref[:, 2 * _LANE:3 * _LANE] = action


def _actor_call(x2d, params, eps2d, out_dim, row_tile):
    """Shared pallas_call path: grid over row tiles, weights resident."""
    assert out_dim <= _LANE
    rows, in_dim = x2d.shape
    rows_p = _round_up(max(rows, row_tile), row_tile)
    if rows_p != rows:
        x2d = jnp.pad(x2d, ((0, rows_p - rows), (0, 0)))
        eps2d = jnp.pad(eps2d, ((0, rows_p - rows), (0, 0)))
    eps_p = jnp.pad(eps2d, ((0, 0), (0, _LANE - out_dim)))  # (rows_p, 128)

    bias_offsets, bias_total = _bias_layout()
    kernel = functools.partial(_actor_kernel, bias_offsets=bias_offsets)

    rows_map = lambda i: (i, 0)      # state / eps / output advance with the grid
    const_map = lambda i: (0, 0)     # weights & bias: same block -> VMEM-resident

    in_specs = [
        pl.BlockSpec((row_tile, in_dim), rows_map),                 # state
        pl.BlockSpec((in_dim, HIDDEN_DIMS[0]), const_map),          # w1
        pl.BlockSpec((HIDDEN_DIMS[0], HIDDEN_DIMS[1]), const_map),  # w2
        pl.BlockSpec((HIDDEN_DIMS[1], HIDDEN_DIMS[2]), const_map),  # w3
        pl.BlockSpec((HIDDEN_DIMS[2], HIDDEN_DIMS[3]), const_map),  # w4
        pl.BlockSpec((HIDDEN_DIMS[3], HIDDEN_DIMS[4]), const_map),  # w5
        pl.BlockSpec((HIDDEN_DIMS[4], _HEAD_WIDTH), const_map),     # w_head
        pl.BlockSpec((1, bias_total), const_map),                   # packed biases
        pl.BlockSpec((row_tile, _LANE), rows_map),                  # eps (lane-padded)
    ]
    out_spec = pl.BlockSpec((row_tile, 3 * _LANE), rows_map)

    dims = (in_dim,) + HIDDEN_DIMS + (_HEAD_WIDTH,)
    mac_terms = sum(dims[i] * dims[i + 1] for i in range(len(dims) - 1))
    weight_bytes = 2 * mac_terms                      # bf16 weights
    bytes_accessed = (weight_bytes + bias_total * 4
                      + rows_p * (in_dim + _LANE + 3 * _LANE) * 4)

    packed = pl.pallas_call(
        kernel,
        out_shape=jax.ShapeDtypeStruct((rows_p, 3 * _LANE), jnp.float32),
        grid=(rows_p // row_tile,),
        in_specs=in_specs,
        out_specs=out_spec,
        compiler_params=pltpu.CompilerParams(
            dimension_semantics=("parallel",),
            vmem_limit_bytes=16 << 20),
        cost_estimate=pl.CostEstimate(
            flops=2 * rows_p * mac_terms,
            transcendentals=3 * rows_p * _LANE,
            bytes_accessed=bytes_accessed),
    )(x2d, params["w1"], params["w2"], params["w3"], params["w4"], params["w5"],
      params["w_head"], params["b_all"], eps_p)

    mu = packed[:rows, 0:out_dim]
    std = packed[:rows, _LANE:_LANE + out_dim]
    action = packed[:rows, 2 * _LANE:2 * _LANE + out_dim]
    return action, mu, std


@functools.partial(jax.jit, static_argnames=("row_tile",))
def actor_forward(state, params, eps, row_tile=8):
    """Single-step Actor forward. Returns (action, mu, std); (mu, std) define
    the Normal distribution the PyTorch module returns."""
    return _actor_call(state, params, eps, eps.shape[-1], row_tile)


@functools.partial(jax.jit, static_argnames=("row_tile",))
def actor_forward_rollout(states, params, eps, row_tile=8):
    """T rollout steps in ONE pallas_call: the weight DMA is amortized across
    all T*B rows (the residency optimization from the perf review).
    For large batches on v7x, raise row_tile to 128-256."""
    t, b, in_dim = states.shape
    out_dim = eps.shape[-1]
    action, mu, std = _actor_call(states.reshape(t * b, in_dim), params,
                                  eps.reshape(t * b, out_dim), out_dim, row_tile)
    rs = lambda a: a.reshape(t, b, out_dim)
    return rs(action), rs(mu), rs(std)


def init_actor_params(key, in_dim, out_dim):
    """PyTorch-style init, natural layout: weights (in, out) f32, biases (out,)."""
    params = {}
    dims = (in_dim,) + HIDDEN_DIMS
    for i in range(5):
        key, k_w, k_b = jax.random.split(key, 3)
        fan_in, fan_out = dims[i], dims[i + 1]
        bound = float(fan_in) ** -0.5
        params[f"w{i + 1}"] = jax.random.uniform(
            k_w, (fan_in, fan_out), jnp.float32, -bound, bound)
        params[f"b{i + 1}"] = jax.random.uniform(
            k_b, (fan_out,), jnp.float32, -bound, bound)
    for name in ("mu", "ls"):
        key, k_w, k_b = jax.random.split(key, 3)
        params[f"w{name}"] = jax.random.uniform(
            k_w, (HIDDEN_DIMS[-1], out_dim), jnp.float32, -0.003, 0.003)
        params[f"b{name}"] = jax.random.uniform(
            k_b, (out_dim,), jnp.float32, -0.003, 0.003)
    return params


def pack_actor_params(params, out_dim):
    """Kernel layout: bf16 weights, lane-aligned fused head, one packed f32 bias row."""
    assert out_dim <= _LANE
    bias_offsets, total = _bias_layout()
    packed = {f"w{i + 1}": params[f"w{i + 1}"].astype(jnp.bfloat16) for i in range(5)}

    w_head = jnp.zeros((HIDDEN_DIMS[-1], _HEAD_WIDTH), jnp.float32)
    w_head = w_head.at[:, :out_dim].set(params["wmu"])
    w_head = w_head.at[:, _LANE:_LANE + out_dim].set(params["wls"])
    packed["w_head"] = w_head.astype(jnp.bfloat16)

    b_all = jnp.zeros((1, total), jnp.float32)
    for i in range(5):
        off = bias_offsets[i]
        b_all = b_all.at[0, off:off + HIDDEN_DIMS[i]].set(params[f"b{i + 1}"])
    off = bias_offsets[5]
    b_all = b_all.at[0, off:off + out_dim].set(params["bmu"])
    b_all = b_all.at[0, off + _LANE:off + _LANE + out_dim].set(params["bls"])
    packed["b_all"] = b_all
    return packed


def _reference_forward(state, params, eps, out_dim):
    """Pure-JAX f32 reference using the same packed (bf16-rounded) weights."""
    bias_offsets, _ = _bias_layout()
    h = state
    for i in range(5):
        off, w = bias_offsets[i], HIDDEN_DIMS[i]
        h = jnp.maximum(
            h @ params[f"w{i + 1}"].astype(jnp.float32)
            + params["b_all"][:, off:off + w], 0.0)
    off = bias_offsets[5]
    z = h @ params["w_head"].astype(jnp.float32) + params["b_all"][:, off:off + _HEAD_WIDTH]
    mu = jnp.tanh(z[:, :out_dim])
    log_std = jnp.tanh(z[:, _LANE:_LANE + out_dim])
    log_std = LOG_STD_MIN + 0.5 * (LOG_STD_MAX - LOG_STD_MIN) * (log_std + 1.0)
    std = jnp.exp(log_std)
    return mu + std * eps, mu, std


def _check(action, mu, std, ref_action, ref_mu, ref_std, out_dim):
    assert bool(jnp.all(std > 0.0)) and bool(jnp.all(std <= 1.0 + 1e-6))
    assert bool(jnp.all(jnp.abs(mu) <= 1.0 + 1e-6))
    assert bool(jnp.all(jnp.isfinite(action)))
    assert bool(jnp.allclose(mu, ref_mu, rtol=5e-2, atol=3e-3))
    assert bool(jnp.allclose(std, ref_std, rtol=5e-2, atol=3e-3))
    assert bool(jnp.allclose(action, ref_action, rtol=5e-2, atol=3e-3))


if __name__ == "__main__":
    key = jax.random.PRNGKey(0)
    k_params, k_state, k_eps, k_states, k_eps_r = jax.random.split(key, 5)

    batch, in_dim, out_dim = 8, 16, 8
    raw_params = init_actor_params(k_params, in_dim, out_dim)
    params = pack_actor_params(raw_params, out_dim)

    # --- single step ---
    state = jax.random.normal(k_state, (batch, in_dim), jnp.float32)
    eps = jax.random.normal(k_eps, (batch, out_dim), jnp.float32)
    action, mu, std = actor_forward(state, params, eps)
    jax.block_until_ready((action, mu, std))
    assert action.shape == (batch, out_dim)
    assert mu.shape == (batch, out_dim) and std.shape == (batch, out_dim)
    ref_a, ref_mu, ref_std = _reference_forward(state, params, eps, out_dim)
    _check(action, mu, std, ref_a, ref_mu, ref_std, out_dim)

    # --- rollout: T steps in one pallas_call, weights resident across the grid ---
    T = 4
    states = jax.random.normal(k_states, (T, batch, in_dim), jnp.float32)
    eps_r = jax.random.normal(k_eps_r, (T, batch, out_dim), jnp.float32)
    a_r, mu_r, std_r = actor_forward_rollout(states, params, eps_r)
    jax.block_until_ready((a_r, mu_r, std_r))
    assert a_r.shape == (T, batch, out_dim)
    ra, rmu, rstd = _reference_forward(
        states.reshape(T * batch, in_dim), params,
        eps_r.reshape(T * batch, out_dim), out_dim)
    _check(a_r.reshape(T * batch, out_dim), mu_r.reshape(T * batch, out_dim),
           std_r.reshape(T * batch, out_dim), ra, rmu, rstd, out_dim)

    print("KERNEL_OK")
</pallas_src>

<mosaic_0001>
module attributes {stable_mosaic.version = 11 : i64} {
  func.func @_actor_kernel(%arg0: i32, %arg1: memref<8x16xf32, #tpu.memory_space<vmem>>, %arg2: memref<16x1024xbf16, #tpu.memory_space<vmem>>, %arg3: memref<1024x512xbf16, #tpu.memory_space<vmem>>, %arg4: memref<512x256xbf16, #tpu.memory_space<vmem>>, %arg5: memref<256x128xbf16, #tpu.memory_space<vmem>>, %arg6: memref<128x64xbf16, #tpu.memory_space<vmem>>, %arg7: memref<64x256xbf16, #tpu.memory_space<vmem>>, %arg8: memref<1x2304xf32, #tpu.memory_space<vmem>>, %arg9: memref<8x128xf32, #tpu.memory_space<vmem>>, %arg10: memref<8x384xf32, #tpu.memory_space<vmem>>) attributes {dimension_semantics = [#tpu.dimension_semantics<parallel>], iteration_bounds = array<i64: 1>, scalar_prefetch = 0 : i64, scratch_operands = 0 : i64, tpu.core_type = #tpu.core_type<tc>, window_params = [{transform_indices = @transform_0, window_bounds = array<i64: 8, 16>}, {pipeline_mode = #tpu.pipeline_mode<synchronous>, transform_indices = @transform_1, window_bounds = array<i64: 16, 1024>}, {pipeline_mode = #tpu.pipeline_mode<synchronous>, transform_indices = @transform_2, window_bounds = array<i64: 1024, 512>}, {pipeline_mode = #tpu.pipeline_mode<synchronous>, transform_indices = @transform_3, window_bounds = array<i64: 512, 256>}, {pipeline_mode = #tpu.pipeline_mode<synchronous>, transform_indices = @transform_4, window_bounds = array<i64: 256, 128>}, {pipeline_mode = #tpu.pipeline_mode<synchronous>, transform_indices = @transform_5, window_bounds = array<i64: 128, 64>}, {pipeline_mode = #tpu.pipeline_mode<synchronous>, transform_indices = @transform_6, window_bounds = array<i64: 64, 256>}, {pipeline_mode = #tpu.pipeline_mode<synchronous>, transform_indices = @transform_7, window_bounds = array<i64: 1, 2304>}, {transform_indices = @transform_8, window_bounds = array<i64: 8, 128>}, {transform_indices = @transform_9, window_bounds = array<i64: 8, 384>}]} {
    %c0 = arith.constant 0 : index
    %c0_0 = arith.constant 0 : index
    %0 = vector.load %arg1[%c0, %c0_0] : memref<8x16xf32, #tpu.memory_space<vmem>>, vector<8x16xf32>
    %1 = arith.truncf %0 : vector<8x16xf32> to vector<8x16xbf16>
    %c0_1 = arith.constant 0 : index
    %c0_2 = arith.constant 0 : index
    %2 = vector.load %arg2[%c0_1, %c0_2] : memref<16x1024xbf16, #tpu.memory_space<vmem>>, vector<16x1024xbf16>
    %cst = arith.constant dense<0.000000e+00> : vector<8x1024xf32>
    %3 = tpu.matmul %1, %2, %cst {dimension_numbers = #tpu.dot_dimension_numbers<[1], [0], [0], [1], [0, 0, 1, 1], [], []>} : vector<8x16xbf16>, vector<16x1024xbf16>, vector<8x1024xf32> -> vector<8x1024xf32>
    %c0_3 = arith.constant 0 : index
    %c0_4 = arith.constant 0 : index
    %4 = vector.load %arg8[%c0_3, %c0_4] : memref<1x2304xf32, #tpu.memory_space<vmem>>, vector<1x1024xf32>
    %5 = vector.broadcast %4 : vector<1x1024xf32> to vector<8x1024xf32>
    %6 = arith.addf %3, %5 : vector<8x1024xf32>
    %cst_5 = arith.constant 0.000000e+00 : f32
    %7 = vector.broadcast %cst_5 : f32 to vector<8x1024xf32>
    %8 = arith.maximumf %6, %7 : vector<8x1024xf32>
    %9 = arith.truncf %8 : vector<8x1024xf32> to vector<8x1024xbf16>
    %c0_6 = arith.constant 0 : index
    %c0_7 = arith.constant 0 : index
    %10 = vector.load %arg3[%c0_6, %c0_7] : memref<1024x512xbf16, #tpu.memory_space<vmem>>, vector<1024x512xbf16>
    %cst_8 = arith.constant dense<0.000000e+00> : vector<8x512xf32>
    %11 = tpu.matmul %9, %10, %cst_8 {dimension_numbers = #tpu.dot_dimension_numbers<[1], [0], [0], [1], [0, 0, 1, 1], [], []>} : vector<8x1024xbf16>, vector<1024x512xbf16>, vector<8x512xf32> -> vector<8x512xf32>
    %c0_9 = arith.constant 0 : index
    %c1024 = arith.constant 1024 : index
    %12 = vector.load %arg8[%c0_9, %c1024] : memref<1x2304xf32, #tpu.memory_space<vmem>>, vector<1x512xf32>
    %13 = vector.broadcast %12 : vector<1x512xf32> to vector<8x512xf32>
    %14 = arith.addf %11, %13 : vector<8x512xf32>
    %cst_10 = arith.constant 0.000000e+00 : f32
    %15 = vector.broadcast %cst_10 : f32 to vector<8x512xf32>
    %16 = arith.maximumf %14, %15 : vector<8x512xf32>
    %17 = arith.truncf %16 : vector<8x512xf32> to vector<8x512xbf16>
    %c0_11 = arith.constant 0 : index
    %c0_12 = arith.constant 0 : index
    %18 = vector.load %arg4[%c0_11, %c0_12] : memref<512x256xbf16, #tpu.memory_space<vmem>>, vector<512x256xbf16>
    %cst_13 = arith.constant dense<0.000000e+00> : vector<8x256xf32>
    %19 = tpu.matmul %17, %18, %cst_13 {dimension_numbers = #tpu.dot_dimension_numbers<[1], [0], [0], [1], [0, 0, 1, 1], [], []>} : vector<8x512xbf16>, vector<512x256xbf16>, vector<8x256xf32> -> vector<8x256xf32>
    %c0_14 = arith.constant 0 : index
    %c1536 = arith.constant 1536 : index
    %20 = vector.load %arg8[%c0_14, %c1536] : memref<1x2304xf32, #tpu.memory_space<vmem>>, vector<1x256xf32>
    %21 = vector.broadcast %20 : vector<1x256xf32> to vector<8x256xf32>
    %22 = arith.addf %19, %21 : vector<8x256xf32>
    %cst_15 = arith.constant 0.000000e+00 : f32
    %23 = vector.broadcast %cst_15 : f32 to vector<8x256xf32>
    %24 = arith.maximumf %22, %23 : vector<8x256xf32>
    %c0_16 = arith.constant 0 : index
    %c0_17 = arith.constant 0 : index
    %25 = vector.load %arg5[%c0_16, %c0_17] : memref<256x128xbf16, #tpu.memory_space<vmem>>, vector<256x128xbf16>
    %26 = arith.extf %25 : vector<256x128xbf16> to vector<256x128xf32>
    %cst_18 = arith.constant dense<0.000000e+00> : vector<8x128xf32>
    %27 = tpu.matmul %24, %26, %cst_18 {dimension_numbers = #tpu.dot_dimension_numbers<[1], [0], [0], [1], [0, 0, 1, 1], [], []>} : vector<8x256xf32>, vector<256x128xf32>, vector<8x128xf32> -> vector<8x128xf32>
    %c0_19 = arith.constant 0 : index
    %c1792 = arith.constant 1792 : index
    %28 = vector.load %arg8[%c0_19, %c1792] : memref<1x2304xf32, #tpu.memory_space<vmem>>, vector<1x128xf32>
    %29 = vector.broadcast %28 : vector<1x128xf32> to vector<8x128xf32>
    %30 = arith.addf %27, %29 : vector<8x128xf32>
    %cst_20 = arith.constant 0.000000e+00 : f32
    %31 = vector.broadcast %cst_20 : f32 to vector<8x128xf32>
    %32 = arith.maximumf %30, %31 : vector<8x128xf32>
    %c0_21 = arith.constant 0 : index
    %c0_22 = arith.constant 0 : index
    %33 = vector.load %arg6[%c0_21, %c0_22] : memref<128x64xbf16, #tpu.memory_space<vmem>>, vector<128x64xbf16>
    %34 = arith.extf %33 : vector<128x64xbf16> to vector<128x64xf32>
    %cst_23 = arith.constant dense<0.000000e+00> : vector<8x64xf32>
    %35 = tpu.matmul %32, %34, %cst_23 {dimension_numbers = #tpu.dot_dimension_numbers<[1], [0], [0], [1], [0, 0, 1, 1], [], []>} : vector<8x128xf32>, vector<128x64xf32>, vector<8x64xf32> -> vector<8x64xf32>
    %c0_24 = arith.constant 0 : index
    %c1920 = arith.constant 1920 : index
    %36 = vector.load %arg8[%c0_24, %c1920] : memref<1x2304xf32, #tpu.memory_space<vmem>>, vector<1x64xf32>
    %37 = vector.broadcast %36 : vector<1x64xf32> to vector<8x64xf32>
    %38 = arith.addf %35, %37 : vector<8x64xf32>
    %cst_25 = arith.constant 0.000000e+00 : f32
    %39 = vector.broadcast %cst_25 : f32 to vector<8x64xf32>
    %40 = arith.maximumf %38, %39 : vector<8x64xf32>
    %c0_26 = arith.constant 0 : index
    %c0_27 = arith.constant 0 : index
    %41 = vector.load %arg7[%c0_26, %c0_27] : memref<64x256xbf16, #tpu.memory_space<vmem>>, vector<64x256xbf16>
    %42 = arith.extf %41 : vector<64x256xbf16> to vector<64x256xf32>
    %cst_28 = arith.constant dense<0.000000e+00> : vector<8x256xf32>
    %43 = tpu.matmul %40, %42, %cst_28 {dimension_numbers = #tpu.dot_dimension_numbers<[1], [0], [0], [1], [0, 0, 1, 1], [], []>} : vector<8x64xf32>, vector<64x256xf32>, vector<8x256xf32> -> vector<8x256xf32>
    %c0_29 = arith.constant 0 : index
    %c2048 = arith.constant 2048 : index
    %44 = vector.load %arg8[%c0_29, %c2048] : memref<1x2304xf32, #tpu.memory_space<vmem>>, vector<1x256xf32>
    %45 = vector.broadcast %44 : vector<1x256xf32> to vector<8x256xf32>
    %46 = arith.addf %43, %45 : vector<8x256xf32>
    %47 = vector.extract_strided_slice %46 {offsets = [0, 0], sizes = [8, 128], strides = [1, 1]} : vector<8x256xf32> to vector<8x128xf32>
    %48 = math.tanh %47 : vector<8x128xf32>
    %49 = vector.extract_strided_slice %46 {offsets = [0, 128], sizes = [8, 128], strides = [1, 1]} : vector<8x256xf32> to vector<8x128xf32>
    %50 = math.tanh %49 : vector<8x128xf32>
    %cst_30 = arith.constant 1.000000e+00 : f32
    %51 = vector.broadcast %cst_30 : f32 to vector<8x128xf32>
    %52 = arith.addf %50, %51 : vector<8x128xf32>
    %cst_31 = arith.constant 1.000000e+01 : f32
    %53 = vector.broadcast %cst_31 : f32 to vector<8x128xf32>
    %54 = arith.mulf %53, %52 : vector<8x128xf32>
    %cst_32 = arith.constant -2.000000e+01 : f32
    %55 = vector.broadcast %cst_32 : f32 to vector<8x128xf32>
    %56 = arith.addf %55, %54 : vector<8x128xf32>
    %57 = math.exp %56 : vector<8x128xf32>
    %c0_33 = arith.constant 0 : index
    %c0_34 = arith.constant 0 : index
    %58 = vector.load %arg9[%c0_33, %c0_34] : memref<8x128xf32, #tpu.memory_space<vmem>>, vector<8x128xf32>
    %59 = arith.mulf %57, %58 : vector<8x128xf32>
    %60 = arith.addf %48, %59 : vector<8x128xf32>
    %c0_35 = arith.constant 0 : index
    %c0_36 = arith.constant 0 : index
    %61 = vector.load %arg10[%c0_35, %c0_36] : memref<8x384xf32, #tpu.memory_space<vmem>>, vector<8x128xf32>
    tpu.vector_store %arg10[%c0_35, %c0_36], %48 {strides = array<i32>} : memref<8x384xf32, #tpu.memory_space<vmem>>, vector<8x128xf32>,
    %c0_37 = arith.constant 0 : index
    %c128 = arith.constant 128 : index
    %62 = vector.load %arg10[%c0_37, %c128] : memref<8x384xf32, #tpu.memory_space<vmem>>, vector<8x128xf32>
    tpu.vector_store %arg10[%c0_37, %c128], %57 {strides = array<i32>} : memref<8x384xf32, #tpu.memory_space<vmem>>, vector<8x128xf32>,
    %c0_38 = arith.constant 0 : index
    %c256 = arith.constant 256 : index
    %63 = vector.load %arg10[%c0_38, %c256] : memref<8x384xf32, #tpu.memory_space<vmem>>, vector<8x128xf32>
    tpu.vector_store %arg10[%c0_38, %c256], %60 {strides = array<i32>} : memref<8x384xf32, #tpu.memory_space<vmem>>, vector<8x128xf32>,
    return
  }
  func.func @transform_0(%arg0: i32) -> (i32, i32) {
    %c0_i32 = arith.constant 0 : i32
    %c0_i32_0 = arith.constant 0 : i32
    return %arg0, %c0_i32 : i32, i32
  }
  func.func @transform_1(%arg0: i32) -> (i32, i32) {
    %c0_i32 = arith.constant 0 : i32
    %c0_i32_0 = arith.constant 0 : i32
    %c0_i32_1 = arith.constant 0 : i32
    return %c0_i32, %c0_i32_0 : i32, i32
  }
  func.func @transform_2(%arg0: i32) -> (i32, i32) {
    %c0_i32 = arith.constant 0 : i32
    %c0_i32_0 = arith.constant 0 : i32
    %c0_i32_1 = arith.constant 0 : i32
    return %c0_i32, %c0_i32_0 : i32, i32
  }
  func.func @transform_3(%arg0: i32) -> (i32, i32) {
    %c0_i32 = arith.constant 0 : i32
    %c0_i32_0 = arith.constant 0 : i32
    %c0_i32_1 = arith.constant 0 : i32
    return %c0_i32, %c0_i32_0 : i32, i32
  }
  func.func @transform_4(%arg0: i32) -> (i32, i32) {
    %c0_i32 = arith.constant 0 : i32
    %c0_i32_0 = arith.constant 0 : i32
    %c0_i32_1 = arith.constant 0 : i32
    return %c0_i32, %c0_i32_0 : i32, i32
  }
  func.func @transform_5(%arg0: i32) -> (i32, i32) {
    %c0_i32 = arith.constant 0 : i32
    %c0_i32_0 = arith.constant 0 : i32
    %c0_i32_1 = arith.constant 0 : i32
    return %c0_i32, %c0_i32_0 : i32, i32
  }
  func.func @transform_6(%arg0: i32) -> (i32, i32) {
    %c0_i32 = arith.constant 0 : i32
    %c0_i32_0 = arith.constant 0 : i32
    %c0_i32_1 = arith.constant 0 : i32
    return %c0_i32, %c0_i32_0 : i32, i32
  }
  func.func @transform_7(%arg0: i32) -> (i32, i32) {
    %c0_i32 = arith.constant 0 : i32
    %c0_i32_0 = arith.constant 0 : i32
    %c0_i32_1 = arith.constant 0 : i32
    return %c0_i32, %c0_i32_0 : i32, i32
  }
  func.func @transform_8(%arg0: i32) -> (i32, i32) {
    %c0_i32 = arith.constant 0 : i32
    %c0_i32_0 = arith.constant 0 : i32
    return %arg0, %c0_i32 : i32, i32
  }
  func.func @transform_9(%arg0: i32) -> (i32, i32) {
    %c0_i32 = arith.constant 0 : i32
    %c0_i32_0 = arith.constant 0 : i32
    return %arg0, %c0_i32 : i32, i32
  }
}

</mosaic_0001>

<llo_original>
// kernel: actor_forward.1
$region0: #{actor_forward.1}
  #allocation0 [shape = 'u32[]', space=smem, size = 0x4, offset = 0x4, fixed_abs, tag = 'smem constant byte address 0x4 - core index']
  #allocation1 [shape = 'u32[144,128]{1,0:T(1,128)}', space=vmem, size = 0x12000, scoped, tag = 'internal scratch']
  %s0 = inlined_call_operand.hbm [shape: f32[8,16], index: 0, kind: input, shape index: {}]
  %s1 = inlined_call_operand.hbm [shape: bf16[16,1024], index: 1, kind: input, shape index: {}]
  %s2 = inlined_call_operand.hbm [shape: bf16[1024,512], index: 2, kind: input, shape index: {}]
  %s3 = inlined_call_operand.hbm [shape: bf16[512,256], index: 3, kind: input, shape index: {}]
  %s4 = inlined_call_operand.vmem [shape: bf16[256,128], index: 4, kind: input, shape index: {}]
  %s5 = inlined_call_operand.vmem [shape: bf16[128,64], index: 5, kind: input, shape index: {}]
  %s6 = inlined_call_operand.hbm [shape: bf16[64,256], index: 6, kind: input, shape index: {}]
  %s7 = inlined_call_operand.hbm [shape: f32[1,2304], index: 7, kind: input, shape index: {}]
  %s8 = inlined_call_operand.vmem [shape: f32[8,128], index: 8, kind: input, shape index: {}]
  %s9 = inlined_call_operand.vmem [shape: f32[8,384], index: 9, kind: output, shape index: {}]
  %s10 = sld [smem:[#allocation0]]
  $region70: #{actor_forward.1} parent=0
    _
  %s12 = ssub.s32 1, %s10
  %s13 = scalar_select 0, %s12, %s10
  $region1: #{actor_forward.1} parent=0
    #allocation2 [shape = 'u8[4096]{0}', space=vmem, size = 0x1000, scoped, tag = 'input window, operand 0, single buffered']
    #allocation3 [shape = 's32[1]{0}', space=sflag, size = 0x4, scoped, tag = 'scoped memory for actor_forward.1']
    #allocation4 [shape = 'u8[32768]{0}', space=vmem, size = 0x8000, scoped, tag = 'input window, operand 1, single buffered']
    #allocation5 [shape = 's32[1]{0}', space=sflag, size = 0x4, scoped, tag = 'scoped memory for actor_forward.1']
    #allocation6 [shape = 'u8[1048576]{0}', space=vmem, size = 0x100000, scoped, tag = 'input window, operand 2, single buffered']
    #allocation7 [shape = 'u8[262144]{0}', space=vmem, size = 0x40000, scoped, tag = 'input window, operand 3, single buffered']
    #allocation8 [shape = 's32[1]{0}', space=sflag, size = 0x4, scoped, tag = 'scoped memory for actor_forward.1']
    #allocation9 [shape = 'u8[32768]{0}', space=vmem, size = 0x8000, scoped, tag = 'input window, operand 6, single buffered']
    #allocation10 [shape = 'u8[9216]{0}', space=vmem, size = 0x2400, scoped, tag = 'input window, operand 7, single buffered']
    #allocation11 [shape = 's32[1]{0}', space=sflag, size = 0x4, scoped, tag = 'scoped memory for actor_forward.1']
    %14 = vsyncpa [#allocation3], 0
    %15 = vsyncpa [#allocation5], 0
    %16 = vsyncpa [#allocation8], 0
    %17 = vsyncpa [#allocation11], 0
    // Predicated region
    $region2: #{actor_forward.1} parent=1 // pred_check
      _
    $region3: #{actor_forward.1} parent=1 // pred_check_branch
      %19 = sbr.rel (0) target = $region5
    $region4: #{actor_forward.1} parent=1 // pred_region
      %s21 = ssub.s32 128, 128
      %22 = vsyncadd [#allocation3], %s21
      %s24 = sshll.u32 [#allocation2], 4
      %s25 = int_to_ptr.vmem [resolvable:$true] %s24
      %27 = dma.hbm_to_vmem [thread:$0]  %s0, 128, %s25, [#allocation3]
    $region5: #{actor_forward.1} parent=1 // pred_fallthru
      _
    // Predicated region
    $region6: #{actor_forward.1} parent=1 // pred_check
      _
    $region7: #{actor_forward.1} parent=1 // pred_check_branch
      %29 = sbr.rel (0) target = $region9
    $region8: #{actor_forward.1} parent=1 // pred_region
      %s31 = ssub.s32 1024, 1024
      %32 = vsyncadd [#allocation5], %s31
      %s33 = sshll.u32 [#allocation4], 4
      %s34 = int_to_ptr.vmem [resolvable:$true] %s33
      %39 = dma.hbm_to_vmem [thread:$0]  %s1, 1024, %s34, [#allocation5], 512, 512, 32
    $region9: #{actor_forward.1} parent=1 // pred_fallthru
      _
    // Predicated region
    $region10: #{actor_forward.1} parent=1 // pred_check
      _
    $region11: #{actor_forward.1} parent=1 // pred_check_branch
      %41 = sbr.rel (0) target = $region13
    $region12: #{actor_forward.1} parent=1 // pred_region
      %s43 = ssub.s32 32768, 32768
      %44 = vsyncadd [#allocation5], %s43
      %s45 = sshll.u32 [#allocation6], 4
      %s46 = int_to_ptr.vmem [resolvable:$true] %s45
      %51 = dma.hbm_to_vmem [thread:$0]  %s2, 32768, %s46, [#allocation5], 256, 256, 16
    $region13: #{actor_forward.1} parent=1 // pred_fallthru
      _
    // Predicated region
    $region14: #{actor_forward.1} parent=1 // pred_check
      _
    $region15: #{actor_forward.1} parent=1 // pred_check_branch
      %53 = sbr.rel (0) target = $region17
    $region16: #{actor_forward.1} parent=1 // pred_region
      %s55 = ssub.s32 8192, 8192
      %56 = vsyncadd [#allocation8], %s55
      %s57 = sshll.u32 [#allocation7], 4
      %s58 = int_to_ptr.vmem [resolvable:$true] %s57
      %63 = dma.hbm_to_vmem [thread:$0]  %s3, 8192, %s58, [#allocation8], 128, 128, 8
    $region17: #{actor_forward.1} parent=1 // pred_fallthru
      _
    // Predicated region
    $region18: #{actor_forward.1} parent=1 // pred_check
      _
    $region19: #{actor_forward.1} parent=1 // pred_check_branch
      %65 = sbr.rel (0) target = $region21
    $region20: #{actor_forward.1} parent=1 // pred_region
      _
    $region21: #{actor_forward.1} parent=1 // pred_fallthru
      _
    // Predicated region
    $region22: #{actor_forward.1} parent=1 // pred_check
      _
    $region23: #{actor_forward.1} parent=1 // pred_check_branch
      %67 = sbr.rel (0) target = $region25
    $region24: #{actor_forward.1} parent=1 // pred_region
      _
    $region25: #{actor_forward.1} parent=1 // pred_fallthru
      _
    // Predicated region
    $region26: #{actor_forward.1} parent=1 // pred_check
      _
    $region27: #{actor_forward.1} parent=1 // pred_check_branch
      %69 = sbr.rel (0) target = $region29
    $region28: #{actor_forward.1} parent=1 // pred_region
      %s71 = ssub.s32 1024, 1024
      %72 = vsyncadd [#allocation8], %s71
      %s73 = sshll.u32 [#allocation9], 4
      %s74 = int_to_ptr.vmem [resolvable:$true] %s73
      %79 = dma.hbm_to_vmem [thread:$0]  %s6, 1024, %s74, [#allocation8], 128, 128, 8
    $region29: #{actor_forward.1} parent=1 // pred_fallthru
      _
    // Predicated region
    $region30: #{actor_forward.1} parent=1 // pred_check
      _
    $region31: #{actor_forward.1} parent=1 // pred_check_branch
      %81 = sbr.rel (0) target = $region33
    $region32: #{actor_forward.1} parent=1 // pred_region
      %s83 = ssub.s32 288, 288
      %84 = vsyncadd [#allocation11], %s83
      %s86 = sshll.u32 [#allocation10], 4
      %s87 = int_to_ptr.vmem [resolvable:$true] %s86
      %89 = dma.hbm_to_vmem [thread:$0]  %s7, 288, %s87, [#allocation11]
    $region33: #{actor_forward.1} parent=1 // pred_fallthru
      _
    // Predicated region
    $region34: #{actor_forward.1} parent=1 // pred_check
      _
    $region35: #{actor_forward.1} parent=1 // pred_check_branch
      %91 = sbr.rel (0) target = $region37
    $region36: #{actor_forward.1} parent=1 // pred_region
      _
    $region37: #{actor_forward.1} parent=1 // pred_fallthru
      _
    // Predicated region
    $region38: #{actor_forward.1} parent=1 // pred_check
      _
    $region39: #{actor_forward.1} parent=1 // pred_check_branch
      %93 = sbr.rel (0) target = $region41
    $region40: #{actor_forward.1} parent=1 // pred_region
      %94 = dma.done [#allocation3], 128
    $region41: #{actor_forward.1} parent=1 // pred_fallthru
      _
    // Predicated region
    $region42: #{actor_forward.1} parent=1 // pred_check
      _
    $region43: #{actor_forward.1} parent=1 // pred_check_branch
      %96 = sbr.rel (0) target = $region45
    $region44: #{actor_forward.1} parent=1 // pred_region
      %97 = dma.done [#allocation5], 1024
    $region45: #{actor_forward.1} parent=1 // pred_fallthru
      _
    // Predicated region
    $region46: #{actor_forward.1} parent=1 // pred_check
      _
    $region47: #{actor_forward.1} parent=1 // pred_check_branch
      %99 = sbr.rel (0) target = $region49
    $region48: #{actor_forward.1} parent=1 // pred_region
      %100 = dma.done [#allocation5], 32768
    $region49: #{actor_forward.1} parent=1 // pred_fallthru
      _
    // Predicated region
    $region50: #{actor_forward.1} parent=1 // pred_check
      _
    $region51: #{actor_forward.1} parent=1 // pred_check_branch
      %102 = sbr.rel (0) target = $region53
    $region52: #{actor_forward.1} parent=1 // pred_region
      %103 = dma.done [#allocation8], 8192
    $region53: #{actor_forward.1} parent=1 // pred_fallthru
      _
    // Predicated region
    $region54: #{actor_forward.1} parent=1 // pred_check
      _
    $region55: #{actor_forward.1} parent=1 // pred_check_branch
      %105 = sbr.rel (0) target = $region57
    $region56: #{actor_forward.1} parent=1 // pred_region
      %106 = dma.done [#allocation8], 1024
    $region57: #{actor_forward.1} parent=1 // pred_fallthru
      _
    // Predicated region
    $region58: #{actor_forward.1} parent=1 // pred_check
      _
    $region59: #{actor_forward.1} parent=1 // pred_check_branch
      %108 = sbr.rel (0) target = $region61
    $region60: #{actor_forward.1} parent=1 // pred_region
      %109 = dma.done [#allocation11], 288
    $region61: #{actor_forward.1} parent=1 // pred_fallthru
      _
    %v111 = vld [vmem:[#allocation2] sm:$0xff]
    %v112 = vpack.c.bf16 %v111, %v111
    %v113 = vld [vmem:[#allocation4] sm:$0xff]
    %v114 = vld [vmem:[#allocation4 + $0x8] sm:$0xff]
    %v115 = vld [vmem:[#allocation4 + $0x10] sm:$0xff]
    %v116 = vld [vmem:[#allocation4 + $0x18] sm:$0xff]
    %v117 = vld [vmem:[#allocation4 + $0x20] sm:$0xff]
    %v118 = vld [vmem:[#allocation4 + $0x28] sm:$0xff]
    %v119 = vld [vmem:[#allocation4 + $0x30] sm:$0xff]
    %v120 = vld [vmem:[#allocation4 + $0x38] sm:$0xff]
    %v121 = vld [vmem:[#allocation10] sm:$0xff]
    %v123 = vlaneseq
    %v124 = vshrl.u32 %v123, 7
    %v125 = vsub.s32 0, %v124
    %v126 = vrot.slane %v121, %v125
    %v127 = vlaneseq
    %v128 = vshrl.u32 %v127, 7
    %v129 = vsub.s32 1, %v128
    %v130 = vrot.slane %v121, %v129
    %v131 = vlaneseq
    %v132 = vshrl.u32 %v131, 7
    %v133 = vsub.s32 2, %v132
    %v134 = vrot.slane %v121, %v133
    %v135 = vlaneseq
    %v136 = vshrl.u32 %v135, 7
    %v137 = vsub.s32 3, %v136
    %v138 = vrot.slane %v121, %v137
    %v139 = vlaneseq
    %v140 = vshrl.u32 %v139, 7
    %v141 = vsub.s32 4, %v140
    %v142 = vrot.slane %v121, %v141
    %v143 = vlaneseq
    %v144 = vshrl.u32 %v143, 7
    %v145 = vsub.s32 5, %v144
    %v146 = vrot.slane %v121, %v145
    %v147 = vlaneseq
    %v148 = vshrl.u32 %v147, 7
    %v149 = vsub.s32 6, %v148
    %v150 = vrot.slane %v121, %v149
    %v151 = vlaneseq
    %v152 = vshrl.u32 %v151, 7
    %v153 = vsub.s32 7, %v152
    %v154 = vrot.slane %v121, %v153
    %v171 = vunpack.c.l.b16 %v113
    %v172 = vunpack.c.h.b16 %v113
    %v173 = vunpack.c.l.b16 %v114
    %v174 = vunpack.c.h.b16 %v114
    %v175 = vunpack.c.l.b16 %v115
    %v176 = vunpack.c.h.b16 %v115
    %v177 = vunpack.c.l.b16 %v116
    %v178 = vunpack.c.h.b16 %v116
    %v179 = vunpack.c.l.b16 %v117
    %v180 = vunpack.c.h.b16 %v117
    %v181 = vunpack.c.l.b16 %v118
    %v182 = vunpack.c.h.b16 %v118
    %v183 = vunpack.c.l.b16 %v119
    %v184 = vunpack.c.h.b16 %v119
    %v185 = vunpack.c.l.b16 %v120
    %v186 = vunpack.c.h.b16 %v120
    %v187 = vpack.c.b16 %v179, %v171
    %v188 = vpack.c.b16 %v180, %v172
    %v189 = vpack.c.b16 %v181, %v173
    %v190 = vpack.c.b16 %v182, %v174
    %v191 = vpack.c.b16 %v183, %v175
    %v192 = vpack.c.b16 %v184, %v176
    %v193 = vpack.c.b16 %v185, %v177
    %v194 = vpack.c.b16 %v186, %v178
    %vm203 = vcmask 130048
    %v205 = vsel %vm203, %v112, 0
    %207 = vmatprep.subr.bf16.mxu0 %v188
    %208 = vmatpush1.bf16.msra.mxu0 %v187
    %209 = vmatprep.subr.bf16.mxu0 0
    %210 = vmatpush1.bf16.msra.mxu0 0
    %211 = vmatprep.subr.bf16.mxu0 0
    %212 = vmatpush1.bf16.msra.mxu0 0
    %213 = vmatprep.subr.bf16.mxu0 0
    %214 = vmatpush1.bf16.msra.mxu0 0
    %215 = vmatprep.subr.bf16.mxu0 0
    %216 = vmatpush1.bf16.msra.mxu0 0
    %217 = vmatprep.subr.bf16.mxu0 0
    %218 = vmatpush1.bf16.msra.mxu0 0
    %219 = vmatprep.subr.bf16.mxu0 0
    %220 = vmatpush1.bf16.msra.mxu0 0
    %221 = vmatprep.subr.bf16.mxu0 0
    %222 = vmatpush1.bf16.msra.mxu0 0
    %223 = vmatprep.subr.bf16.mxu0 0
    %224 = vmatpush1.bf16.msra.mxu0 0
    %225 = vmatprep.subr.bf16.mxu0 0
    %226 = vmatpush1.bf16.msra.mxu0 0
    %227 = vmatprep.subr.bf16.mxu0 0
    %228 = vmatpush1.bf16.msra.mxu0 0
    %229 = vmatprep.subr.bf16.mxu0 0
    %230 = vmatpush1.bf16.msra.mxu0 0
    %231 = vmatprep.subr.bf16.mxu0 0
    %232 = vmatpush1.bf16.msra.mxu0 0
    %233 = vmatprep.subr.bf16.mxu0 0
    %234 = vmatpush1.bf16.msra.mxu0 0
    %235 = vmatprep.subr.bf16.mxu0 0
    %236 = vmatpush1.bf16.msra.mxu0 0
    %237 = vmatprep.subr.bf16.mxu0 0
    %238 = vmatpush1.bf16.msra.mxu0 0
    %239 = vmatprep.mubr.bf16.mxu0 0
    %240 = vmatmul.mubr.bf16.gmra.mrb[0].mxu0 %v205
    %v241 = vpop.f32.mrb[0].mxu0
    %v242 = vadd.f32 %v126, %v241
    %v243 = vpop.f32.mrb[0].mxu0
    %v244 = vadd.f32 %v130, %v243
    %v245 = vpop.f32.mrb[0].mxu0
    %v246 = vpop.f32.mrb[0].mxu0
    %247 = vdwg.mxu0
    %248 = vmatprep.subr.bf16.mxu0 %v190
    %249 = vmatpush1.bf16.msra.mxu0 %v189
    %250 = vmatprep.subr.bf16.mxu0 0
    %251 = vmatpush1.bf16.msra.mxu0 0
    %252 = vmatprep.subr.bf16.mxu0 0
    %253 = vmatpush1.bf16.msra.mxu0 0
    %254 = vmatprep.subr.bf16.mxu0 0
    %255 = vmatpush1.bf16.msra.mxu0 0
    %256 = vmatprep.subr.bf16.mxu0 0
    %257 = vmatpush1.bf16.msra.mxu0 0
    %258 = vmatprep.subr.bf16.mxu0 0
    %259 = vmatpush1.bf16.msra.mxu0 0
    %260 = vmatprep.subr.bf16.mxu0 0
    %261 = vmatpush1.bf16.msra.mxu0 0
    %262 = vmatprep.subr.bf16.mxu0 0
    %263 = vmatpush1.bf16.msra.mxu0 0
    %264 = vmatprep.subr.bf16.mxu0 0
    %265 = vmatpush1.bf16.msra.mxu0 0
    %266 = vmatprep.subr.bf16.mxu0 0
    %267 = vmatpush1.bf16.msra.mxu0 0
    %268 = vmatprep.subr.bf16.mxu0 0
    %269 = vmatpush1.bf16.msra.mxu0 0
    %270 = vmatprep.subr.bf16.mxu0 0
    %271 = vmatpush1.bf16.msra.mxu0 0
    %272 = vmatprep.subr.bf16.mxu0 0
    %273 = vmatpush1.bf16.msra.mxu0 0
    %274 = vmatprep.subr.bf16.mxu0 0
    %275 = vmatpush1.bf16.msra.mxu0 0
    %276 = vmatprep.subr.bf16.mxu0 0
    %277 = vmatpush1.bf16.msra.mxu0 0
    %278 = vmatprep.subr.bf16.mxu0 0
    %279 = vmatpush1.bf16.msra.mxu0 0
    %280 = vmatprep.mubr.bf16.mxu0 0
    %281 = vmatmul.mubr.bf16.gmra.mrb[0].mxu0 %v205
    %v282 = vpop.f32.mrb[0].mxu0
    %v283 = vadd.f32 %v134, %v282
    %v284 = vpop.f32.mrb[0].mxu0
    %v285 = vadd.f32 %v138, %v284
    %v286 = vpop.f32.mrb[0].mxu0
    %v287 = vpop.f32.mrb[0].mxu0
    %288 = vdwg.mxu0
    %289 = vmatprep.subr.bf16.mxu0 %v192
    %290 = vmatpush1.bf16.msra.mxu0 %v191
    %291 = vmatprep.subr.bf16.mxu0 0
    %292 = vmatpush1.bf16.msra.mxu0 0
    %293 = vmatprep.subr.bf16.mxu0 0
    %294 = vmatpush1.bf16.msra.mxu0 0
    %295 = vmatprep.subr.bf16.mxu0 0
    %296 = vmatpush1.bf16.msra.mxu0 0
    %297 = vmatprep.subr.bf16.mxu0 0
    %298 = vmatpush1.bf16.msra.mxu0 0
    %299 = vmatprep.subr.bf16.mxu0 0
    %300 = vmatpush1.bf16.msra.mxu0 0
    %301 = vmatprep.subr.bf16.mxu0 0
    %302 = vmatpush1.bf16.msra.mxu0 0
    %303 = vmatprep.subr.bf16.mxu0 0
    %304 = vmatpush1.bf16.msra.mxu0 0
    %305 = vmatprep.subr.bf16.mxu0 0
    %306 = vmatpush1.bf16.msra.mxu0 0
    %307 = vmatprep.subr.bf16.mxu0 0
    %308 = vmatpush1.bf16.msra.mxu0 0
    %309 = vmatprep.subr.bf16.mxu0 0
    %310 = vmatpush1.bf16.msra.mxu0 0
    %311 = vmatprep.subr.bf16.mxu0 0
    %312 = vmatpush1.bf16.msra.mxu0 0
    %313 = vmatprep.subr.bf16.mxu0 0
    %314 = vmatpush1.bf16.msra.mxu0 0
    %315 = vmatprep.subr.bf16.mxu0 0
    %316 = vmatpush1.bf16.msra.mxu0 0
    %317 = vmatprep.subr.bf16.mxu0 0
    %318 = vmatpush1.bf16.msra.mxu0 0
    %319 = vmatprep.subr.bf16.mxu0 0
    %320 = vmatpush1.bf16.msra.mxu0 0
    %321 = vmatprep.mubr.bf16.mxu0 0
    %322 = vmatmul.mubr.bf16.gmra.mrb[0].mxu0 %v205
    %v323 = vpop.f32.mrb[0].mxu0
    %v324 = vadd.f32 %v142, %v323
    %v325 = vpop.f32.mrb[0].mxu0
    %v326 = vadd.f32 %v146, %v325
    %v327 = vpop.f32.mrb[0].mxu0
    %v328 = vpop.f32.mrb[0].mxu0
    %329 = vdwg.mxu0
    %330 = vmatprep.subr.bf16.mxu0 %v194
    %331 = vmatpush1.bf16.msra.mxu0 %v193
    %332 = vmatprep.subr.bf16.mxu0 0
    %333 = vmatpush1.bf16.msra.mxu0 0
    %334 = vmatprep.subr.bf16.mxu0 0
    %335 = vmatpush1.bf16.msra.mxu0 0
    %336 = vmatprep.subr.bf16.mxu0 0
    %337 = vmatpush1.bf16.msra.mxu0 0
    %338 = vmatprep.subr.bf16.mxu0 0
    %339 = vmatpush1.bf16.msra.mxu0 0
    %340 = vmatprep.subr.bf16.mxu0 0
    %341 = vmatpush1.bf16.msra.mxu0 0
    %342 = vmatprep.subr.bf16.mxu0 0
    %343 = vmatpush1.bf16.msra.mxu0 0
    %344 = vmatprep.subr.bf16.mxu0 0
    %345 = vmatpush1.bf16.msra.mxu0 0
    %346 = vmatprep.subr.bf16.mxu0 0
    %347 = vmatpush1.bf16.msra.mxu0 0
    %348 = vmatprep.subr.bf16.mxu0 0
    %349 = vmatpush1.bf16.msra.mxu0 0
    %350 = vmatprep.subr.bf16.mxu0 0
    %351 = vmatpush1.bf16.msra.mxu0 0
    %352 = vmatprep.subr.bf16.mxu0 0
    %353 = vmatpush1.bf16.msra.mxu0 0
    %354 = vmatprep.subr.bf16.mxu0 0
    %355 = vmatpush1.bf16.msra.mxu0 0
    %356 = vmatprep.subr.bf16.mxu0 0
    %357 = vmatpush1.bf16.msra.mxu0 0
    %358 = vmatprep.subr.bf16.mxu0 0
    %359 = vmatpush1.bf16.msra.mxu0 0
    %360 = vmatprep.subr.bf16.mxu0 0
    %361 = vmatpush1.bf16.msra.mxu0 0
    %362 = vmatprep.mubr.bf16.mxu0 0
    %363 = vmatmul.mubr.bf16.gmra.mrb[0].mxu0 %v205
    %v364 = vpop.f32.mrb[0].mxu0
    %v365 = vadd.f32 %v150, %v364
    %v366 = vpop.f32.mrb[0].mxu0
    %v367 = vadd.f32 %v154, %v366
    %v368 = vpop.f32.mrb[0].mxu0
    %v369 = vpop.f32.mrb[0].mxu0
    %370 = vdwg.mxu0
    %v371 = vmax.f32 %v242, 0.0
    %v372 = vmax.f32 %v244, 0.0
    %v373 = vmax.f32 %v283, 0.0
    %v374 = vmax.f32 %v285, 0.0
    %v375 = vmax.f32 %v324, 0.0
    %v376 = vmax.f32 %v326, 0.0
    %v377 = vmax.f32 %v365, 0.0
    %v378 = vmax.f32 %v367, 0.0
    %v379 = vpack.c.bf16 %v371, %v371
    %v380 = vpack.c.bf16 %v372, %v372
    %v381 = vpack.c.bf16 %v373, %v373
    %v382 = vpack.c.bf16 %v374, %v374
    %v383 = vpack.c.bf16 %v375, %v375
    %v384 = vpack.c.bf16 %v376, %v376
    %v385 = vpack.c.bf16 %v377, %v377
    %v386 = vpack.c.bf16 %v378, %v378
    %v387 = vld [vmem:[#allocation6] sm:$0xff]
    %v388 = vld [vmem:[#allocation6 + $0x8] sm:$0xff]
    %v389 = vld [vmem:[#allocation6 + $0x10] sm:$0xff]
    %v390 = vld [vmem:[#allocation6 + $0x18] sm:$0xff]
    %v391 = vld [vmem:[#allocation6 + $0x20] sm:$0xff]
    %v392 = vld [vmem:[#allocation6 + $0x28] sm:$0xff]
    %v393 = vld [vmem:[#allocation6 + $0x30] sm:$0xff]
    %v394 = vld [vmem:[#allocation6 + $0x38] sm:$0xff]
    %v395 = vld [vmem:[#allocation6 + $0x40] sm:$0xff]
    %v396 = vld [vmem:[#allocation6 + $0x48] sm:$0xff]
    %v397 = vld [vmem:[#allocation6 + $0x50] sm:$0xff]
    %v398 = vld [vmem:[#allocation6 + $0x58] sm:$0xff]
    %v399 = vld [vmem:[#allocation6 + $0x60] sm:$0xff]
    %v400 = vld [vmem:[#allocation6 + $0x68] sm:$0xff]
    %v401 = vld [vmem:[#allocation6 + $0x70] sm:$0xff]
    %v402 = vld [vmem:[#allocation6 + $0x78] sm:$0xff]
    %v403 = vld [vmem:[#allocation6 + $0x80] sm:$0xff]
    %v404 = vld [vmem:[#allocation6 + $0x88] sm:$0xff]
    %v405 = vld [vmem:[#allocation6 + $0x90] sm:$0xff]
    %v406 = vld [vmem:[#allocation6 + $0x98] sm:$0xff]
    %v407 = vld [vmem:[#allocation6 + $0xa0] sm:$0xff]
    %v408 = vld [vmem:[#allocation6 + $0xa8] sm:$0xff]
    %v409 = vld [vmem:[#allocation6 + $0xb0] sm:$0xff]
    %v410 = vld [vmem:[#allocation6 + $0xb8] sm:$0xff]
    %v411 = vld [vmem:[#allocation6 + $0xc0] sm:$0xff]
    %v412 = vld [vmem:[#allocation6 + $0xc8] sm:$0xff]
    %v413 = vld [vmem:[#allocation6 + $0xd0] sm:$0xff]
    %v414 = vld [vmem:[#allocation6 + $0xd8] sm:$0xff]
    %v415 = vld [vmem:[#allocation6 + $0xe0] sm:$0xff]
    %v416 = vld [vmem:[#allocation6 + $0xe8] sm:$0xff]
    %v417 = vld [vmem:[#allocation6 + $0xf0] sm:$0xff]
    %v418 = vld [vmem:[#allocation6 + $0xf8] sm:$0xff]
    %v419 = vld [vmem:[#allocation6 + $0x100] sm:$0xff]
    %v420 = vld [vmem:[#allocation6 + $0x108] sm:$0xff]
    %v421 = vld [vmem:[#allocation6 + $0x110] sm:$0xff]
    %v422 = vld [vmem:[#allocation6 + $0x118] sm:$0xff]
    %v423 = vld [vmem:[#allocation6 + $0x120] sm:$0xff]
    %v424 = vld [vmem:[#allocation6 + $0x128] sm:$0xff]
    %v425 = vld [vmem:[#allocation6 + $0x130] sm:$0xff]
    %v426 = vld [vmem:[#allocation6 + $0x138] sm:$0xff]
    %v427 = vld [vmem:[#allocation6 + $0x140] sm:$0xff]
    %v428 = vld [vmem:[#allocation6 + $0x148] sm:$0xff]
    %v429 = vld [vmem:[#allocation6 + $0x150] sm:$0xff]
    %v430 = vld [vmem:[#allocation6 + $0x158] sm:$0xff]
    %v431 = vld [vmem:[#allocation6 + $0x160] sm:$0xff]
    %v432 = vld [vmem:[#allocation6 + $0x168] sm:$0xff]
    %v433 = vld [vmem:[#allocation6 + $0x170] sm:$0xff]
    %v434 = vld [vmem:[#allocation6 + $0x178] sm:$0xff]
    %v435 = vld [vmem:[#allocation6 + $0x180] sm:$0xff]
    %v436 = vld [vmem:[#allocation6 + $0x188] sm:$0xff]
    %v437 = vld [vmem:[#allocation6 + $0x190] sm:$0xff]
    %v438 = vld [vmem:[#allocation6 + $0x198] sm:$0xff]
    %v439 = vld [vmem:[#allocation6 + $0x1a0] sm:$0xff]
    %v440 = vld [vmem:[#allocation6 + $0x1a8] sm:$0xff]
    %v441 = vld [vmem:[#allocation6 + $0x1b0] sm:$0xff]
    %v442 = vld [vmem:[#allocation6 + $0x1b8] sm:$0xff]
    %v443 = vld [vmem:[#allocation6 + $0x1c0] sm:$0xff]
    %v444 = vld [vmem:[#allocation6 + $0x1c8] sm:$0xff]
    %v445 = vld [vmem:[#allocation6 + $0x1d0] sm:$0xff]
    %v446 = vld [vmem:[#allocation6 + $0x1d8] sm:$0xff]
    %v447 = vld [vmem:[#allocation6 + $0x1e0] sm:$0xff]
    %v448 = vld [vmem:[#allocation6 + $0x1e8] sm:$0xff]
    %v449 = vld [vmem:[#allocation6 + $0x1f0] sm:$0xff]
    %v450 = vld [vmem:[#allocation6 + $0x1f8] sm:$0xff]
    %v451 = vld [vmem:[#allocation6 + $0x200] sm:$0xff]
    %v452 = vld [vmem:[#allocation6 + $0x208] sm:$0xff]
    %v453 = vld [vmem:[#allocation6 + $0x210] sm:$0xff]
    %v454 = vld [vmem:[#allocation6 + $0x218] sm:$0xff]
    %v455 = vld [vmem:[#allocation6 + $0x220] sm:$0xff]
    %v456 = vld [vmem:[#allocation6 + $0x228] sm:$0xff]
    %v457 = vld [vmem:[#allocation6 + $0x230] sm:$0xff]
    %v458 = vld [vmem:[#allocation6 + $0x238] sm:$0xff]
    %v459 = vld [vmem:[#allocation6 + $0x240] sm:$0xff]
    %v460 = vld [vmem:[#allocation6 + $0x248] sm:$0xff]
    %v461 = vld [vmem:[#allocation6 + $0x250] sm:$0xff]
    %v462 = vld [vmem:[#allocation6 + $0x258] sm:$0xff]
    %v463 = vld [vmem:[#allocation6 + $0x260] sm:$0xff]
    %v464 = vld [vmem:[#allocation6 + $0x268] sm:$0xff]
    %v465 = vld [vmem:[#allocation6 + $0x270] sm:$0xff]
    %v466 = vld [vmem:[#allocation6 + $0x278] sm:$0xff]
    %v467 = vld [vmem:[#allocation6 + $0x280] sm:$0xff]
    %v468 = vld [vmem:[#allocation6 + $0x288] sm:$0xff]
    %v469 = vld [vmem:[#allocation6 + $0x290] sm:$0xff]
    %v470 = vld [vmem:[#allocation6 + $0x298] sm:$0xff]
    %v471 = vld [vmem:[#allocation6 + $0x2a0] sm:$0xff]
    %v472 = vld [vmem:[#allocation6 + $0x2a8] sm:$0xff]
    %v473 = vld [vmem:[#allocation6 + $0x2b0] sm:$0xff]
    %v474 = vld [vmem:[#allocation6 + $0x2b8] sm:$0xff]
    %v475 = vld [vmem:[#allocation6 + $0x2c0] sm:$0xff]
    %v476 = vld [vmem:[#allocation6 + $0x2c8] sm:$0xff]
    %v477 = vld [vmem:[#allocation6 + $0x2d0] sm:$0xff]
    %v478 = vld [vmem:[#allocation6 + $0x2d8] sm:$0xff]
    %v479 = vld [vmem:[#allocation6 + $0x2e0] sm:$0xff]
    %v480 = vld [vmem:[#allocation6 + $0x2e8] sm:$0xff]
    %v481 = vld [vmem:[#allocation6 + $0x2f0] sm:$0xff]
    %v482 = vld [vmem:[#allocation6 + $0x2f8] sm:$0xff]
    %v483 = vld [vmem:[#allocation6 + $0x300] sm:$0xff]
    %v484 = vld [vmem:[#allocation6 + $0x308] sm:$0xff]
    %v485 = vld [vmem:[#allocation6 + $0x310] sm:$0xff]
    %v486 = vld [vmem:[#allocation6 + $0x318] sm:$0xff]
    %v487 = vld [vmem:[#allocation6 + $0x320] sm:$0xff]
    %v488 = vld [vmem:[#allocation6 + $0x328] sm:$0xff]
    %v489 = vld [vmem:[#allocation6 + $0x330] sm:$0xff]
    %v490 = vld [vmem:[#allocation6 + $0x338] sm:$0xff]
    %v491 = vld [vmem:[#allocation6 + $0x340] sm:$0xff]
    %v492 = vld [vmem:[#allocation6 + $0x348] sm:$0xff]
    %v493 = vld [vmem:[#allocation6 + $0x350] sm:$0xff]
    %v494 = vld [vmem:[#allocation6 + $0x358] sm:$0xff]
    %v495 = vld [vmem:[#allocation6 + $0x360] sm:$0xff]
    %v496 = vld [vmem:[#allocation6 + $0x368] sm:$0xff]
    %v497 = vld [vmem:[#allocation6 + $0x370] sm:$0xff]
    %v498 = vld [vmem:[#allocation6 + $0x378] sm:$0xff]
    %v499 = vld [vmem:[#allocation6 + $0x380] sm:$0xff]
    %v500 = vld [vmem:[#allocation6 + $0x388] sm:$0xff]
    %v501 = vld [vmem:[#allocation6 + $0x390] sm:$0xff]
    %v502 = vld [vmem:[#allocation6 + $0x398] sm:$0xff]
    %v503 = vld [vmem:[#allocation6 + $0x3a0] sm:$0xff]
    %v504 = vld [vmem:[#allocation6 + $0x3a8] sm:$0xff]
    %v505 = vld [vmem:[#allocation6 + $0x3b0] sm:$0xff]
    %v506 = vld [vmem:[#allocation6 + $0x3b8] sm:$0xff]
    %v507 = vld [vmem:[#allocation6 + $0x3c0] sm:$0xff]
    %v508 = vld [vmem:[#allocation6 + $0x3c8] sm:$0xff]
    %v509 = vld [vmem:[#allocation6 + $0x3d0] sm:$0xff]
    %v510 = vld [vmem:[#allocation6 + $0x3d8] sm:$0xff]
    %v511 = vld [vmem:[#allocation6 + $0x3e0] sm:$0xff]
    %v512 = vld [vmem:[#allocation6 + $0x3e8] sm:$0xff]
    %v513 = vld [vmem:[#allocation6 + $0x3f0] sm:$0xff]
    %v514 = vld [vmem:[#allocation6 + $0x3f8] sm:$0xff]
    %v515 = vld [vmem:[#allocation6 + $0x400] sm:$0xff]
    %v516 = vld [vmem:[#allocation6 + $0x408] sm:$0xff]
    %v517 = vld [vmem:[#allocation6 + $0x410] sm:$0xff]
    %v518 = vld [vmem:[#allocation6 + $0x418] sm:$0xff]
    %v519 = vld [vmem:[#allocation6 + $0x420] sm:$0xff]
    %v520 = vld [vmem:[#allocation6 + $0x428] sm:$0xff]
    %v521 = vld [vmem:[#allocation6 + $0x430] sm:$0xff]
    %v522 = vld [vmem:[#allocation6 + $0x438] sm:$0xff]
    %v523 = vld [vmem:[#allocation6 + $0x440] sm:$0xff]
    %v524 = vld [vmem:[#allocation6 + $0x448] sm:$0xff]
    %v525 = vld [vmem:[#allocation6 + $0x450] sm:$0xff]
    %v526 = vld [vmem:[#allocation6 + $0x458] sm:$0xff]
    %v527 = vld [vmem:[#allocation6 + $0x460] sm:$0xff]
    %v528 = vld [vmem:[#allocation6 + $0x468] sm:$0xff]
    %v529 = vld [vmem:[#allocation6 + $0x470] sm:$0xff]
    %v530 = vld [vmem:[#allocation6 + $0x478] sm:$0xff]
    %v531 = vld [vmem:[#allocation6 + $0x480] sm:$0xff]
    %v532 = vld [vmem:[#allocation6 + $0x488] sm:$0xff]
    %v533 = vld [vmem:[#allocation6 + $0x490] sm:$0xff]
    %v534 = vld [vmem:[#allocation6 + $0x498] sm:$0xff]
    %v535 = vld [vmem:[#allocation6 + $0x4a0] sm:$0xff]
    %v536 = vld [vmem:[#allocation6 + $0x4a8] sm:$0xff]
    %v537 = vld [vmem:[#allocation6 + $0x4b0] sm:$0xff]
    %v538 = vld [vmem:[#allocation6 + $0x4b8] sm:$0xff]
    %v539 = vld [vmem:[#allocation6 + $0x4c0] sm:$0xff]
    %v540 = vld [vmem:[#allocation6 + $0x4c8] sm:$0xff]
    %v541 = vld [vmem:[#allocation6 + $0x4d0] sm:$0xff]
    %v542 = vld [vmem:[#allocation6 + $0x4d8] sm:$0xff]
    %v543 = vld [vmem:[#allocation6 + $0x4e0] sm:$0xff]
    %v544 = vld [vmem:[#allocation6 + $0x4e8] sm:$0xff]
    %v545 = vld [vmem:[#allocation6 + $0x4f0] sm:$0xff]
    %v546 = vld [vmem:[#allocation6 + $0x4f8] sm:$0xff]
    %v547 = vld [vmem:[#allocation6 + $0x500] sm:$0xff]
    %v548 = vld [vmem:[#allocation6 + $0x508] sm:$0xff]
    %v549 = vld [vmem:[#allocation6 + $0x510] sm:$0xff]
    %v550 = vld [vmem:[#allocation6 + $0x518] sm:$0xff]
    %v551 = vld [vmem:[#allocation6 + $0x520] sm:$0xff]
    %v552 = vld [vmem:[#allocation6 + $0x528] sm:$0xff]
    %v553 = vld [vmem:[#allocation6 + $0x530] sm:$0xff]
    %v554 = vld [vmem:[#allocation6 + $0x538] sm:$0xff]
    %v555 = vld [vmem:[#allocation6 + $0x540] sm:$0xff]
    %v556 = vld [vmem:[#allocation6 + $0x548] sm:$0xff]
    %v557 = vld [vmem:[#allocation6 + $0x550] sm:$0xff]
    %v558 = vld [vmem:[#allocation6 + $0x558] sm:$0xff]
    %v559 = vld [vmem:[#allocation6 + $0x560] sm:$0xff]
    %v560 = vld [vmem:[#allocation6 + $0x568] sm:$0xff]
    %v561 = vld [vmem:[#allocation6 + $0x570] sm:$0xff]
    %v562 = vld [vmem:[#allocation6 + $0x578] sm:$0xff]
    %v563 = vld [vmem:[#allocation6 + $0x580] sm:$0xff]
    %v564 = vld [vmem:[#allocation6 + $0x588] sm:$0xff]
    %v565 = vld [vmem:[#allocation6 + $0x590] sm:$0xff]
    %v566 = vld [vmem:[#allocation6 + $0x598] sm:$0xff]
    %v567 = vld [vmem:[#allocation6 + $0x5a0] sm:$0xff]
    %v568 = vld [vmem:[#allocation6 + $0x5a8] sm:$0xff]
    %v569 = vld [vmem:[#allocation6 + $0x5b0] sm:$0xff]
    %v570 = vld [vmem:[#allocation6 + $0x5b8] sm:$0xff]
    %v571 = vld [vmem:[#allocation6 + $0x5c0] sm:$0xff]
    %v572 = vld [vmem:[#allocation6 + $0x5c8] sm:$0xff]
    %v573 = vld [vmem:[#allocation6 + $0x5d0] sm:$0xff]
    %v574 = vld [vmem:[#allocation6 + $0x5d8] sm:$0xff]
    %v575 = vld [vmem:[#allocation6 + $0x5e0] sm:$0xff]
    %v576 = vld [vmem:[#allocation6 + $0x5e8] sm:$0xff]
    %v577 = vld [vmem:[#allocation6 + $0x5f0] sm:$0xff]
    %v578 = vld [vmem:[#allocation6 + $0x5f8] sm:$0xff]
    %v579 = vld [vmem:[#allocation6 + $0x600] sm:$0xff]
    %v580 = vld [vmem:[#allocation6 + $0x608] sm:$0xff]
    %v581 = vld [vmem:[#allocation6 + $0x610] sm:$0xff]
    %v582 = vld [vmem:[#allocation6 + $0x618] sm:$0xff]
    %v583 = vld [vmem:[#allocation6 + $0x620] sm:$0xff]
    %v584 = vld [vmem:[#allocation6 + $0x628] sm:$0xff]
    %v585 = vld [vmem:[#allocation6 + $0x630] sm:$0xff]
    %v586 = vld [vmem:[#allocation6 + $0x638] sm:$0xff]
    %v587 = vld [vmem:[#allocation6 + $0x640] sm:$0xff]
    %v588 = vld [vmem:[#allocation6 + $0x648] sm:$0xff]
    %v589 = vld [vmem:[#allocation6 + $0x650] sm:$0xff]
    %v590 = vld [vmem:[#allocation6 + $0x658] sm:$0xff]
    %v591 = vld [vmem:[#allocation6 + $0x660] sm:$0xff]
    %v592 = vld [vmem:[#allocation6 + $0x668] sm:$0xff]
    %v593 = vld [vmem:[#allocation6 + $0x670] sm:$0xff]
    %v594 = vld [vmem:[#allocation6 + $0x678] sm:$0xff]
    %v595 = vld [vmem:[#allocation6 + $0x680] sm:$0xff]
    %v596 = vld [vmem:[#allocation6 + $0x688] sm:$0xff]
    %v597 = vld [vmem:[#allocation6 + $0x690] sm:$0xff]
    %v598 = vld [vmem:[#allocation6 + $0x698] sm:$0xff]
    %v599 = vld [vmem:[#allocation6 + $0x6a0] sm:$0xff]
    %v600 = vld [vmem:[#allocation6 + $0x6a8] sm:$0xff]
    %v601 = vld [vmem:[#allocation6 + $0x6b0] sm:$0xff]
    %v602 = vld [vmem:[#allocation6 + $0x6b8] sm:$0xff]
    %v603 = vld [vmem:[#allocation6 + $0x6c0] sm:$0xff]
    %v604 = vld [vmem:[#allocation6 + $0x6c8] sm:$0xff]
    %v605 = vld [vmem:[#allocation6 + $0x6d0] sm:$0xff]
    %v606 = vld [vmem:[#allocation6 + $0x6d8] sm:$0xff]
    %v607 = vld [vmem:[#allocation6 + $0x6e0] sm:$0xff]
    %v608 = vld [vmem:[#allocation6 + $0x6e8] sm:$0xff]
    %v609 = vld [vmem:[#allocation6 + $0x6f0] sm:$0xff]
    %v610 = vld [vmem:[#allocation6 + $0x6f8] sm:$0xff]
    %v611 = vld [vmem:[#allocation6 + $0x700] sm:$0xff]
    %v612 = vld [vmem:[#allocation6 + $0x708] sm:$0xff]
    %v613 = vld [vmem:[#allocation6 + $0x710] sm:$0xff]
    %v614 = vld [vmem:[#allocation6 + $0x718] sm:$0xff]
    %v615 = vld [vmem:[#allocation6 + $0x720] sm:$0xff]
    %v616 = vld [vmem:[#allocation6 + $0x728] sm:$0xff]
    %v617 = vld [vmem:[#allocation6 + $0x730] sm:$0xff]
    %v618 = vld [vmem:[#allocation6 + $0x738] sm:$0xff]
    %v619 = vld [vmem:[#allocation6 + $0x740] sm:$0xff]
    %v620 = vld [vmem:[#allocation6 + $0x748] sm:$0xff]
    %v621 = vld [vmem:[#allocation6 + $0x750] sm:$0xff]
    %v622 = vld [vmem:[#allocation6 + $0x758] sm:$0xff]
    %v623 = vld [vmem:[#allocation6 + $0x760] sm:$0xff]
    %v624 = vld [vmem:[#allocation6 + $0x768] sm:$0xff]
    %v625 = vld [vmem:[#allocation6 + $0x770] sm:$0xff]
    %v626 = vld [vmem:[#allocation6 + $0x778] sm:$0xff]
    %v627 = vld [vmem:[#allocation6 + $0x780] sm:$0xff]
    %v628 = vld [vmem:[#allocation6 + $0x788] sm:$0xff]
    %v629 = vld [vmem:[#allocation6 + $0x790] sm:$0xff]
    %v630 = vld [vmem:[#allocation6 + $0x798] sm:$0xff]
    %v631 = vld [vmem:[#allocation6 + $0x7a0] sm:$0xff]
    %v632 = vld [vmem:[#allocation6 + $0x7a8] sm:$0xff]
    %v633 = vld [vmem:[#allocation6 + $0x7b0] sm:$0xff]
    %v634 = vld [vmem:[#allocation6 + $0x7b8] sm:$0xff]
    %v635 = vld [vmem:[#allocation6 + $0x7c0] sm:$0xff]
    %v636 = vld [vmem:[#allocation6 + $0x7c8] sm:$0xff]
    %v637 = vld [vmem:[#allocation6 + $0x7d0] sm:$0xff]
    %v638 = vld [vmem:[#allocation6 + $0x7d8] sm:$0xff]
    %v639 = vld [vmem:[#allocation6 + $0x7e0] sm:$0xff]
    %v640 = vld [vmem:[#allocation6 + $0x7e8] sm:$0xff]
    %v641 = vld [vmem:[#allocation6 + $0x7f0] sm:$0xff]
    %v642 = vld [vmem:[#allocation6 + $0x7f8] sm:$0xff]
    %v643 = vld [vmem:[#allocation10 + $0x8] sm:$0xf]
    %v645 = vlaneseq
    %v646 = vshrl.u32 %v645, 7
    %v647 = vsub.s32 0, %v646
    %v648 = vrot.slane %v643, %v647
    %v649 = vlaneseq
    %v650 = vshrl.u32 %v649, 7
    %v651 = vsub.s32 1, %v650
    %v652 = vrot.slane %v643, %v651
    %v653 = vlaneseq
    %v654 = vshrl.u32 %v653, 7
    %v655 = vsub.s32 2, %v654
    %v656 = vrot.slane %v643, %v655
    %v657 = vlaneseq
    %v658 = vshrl.u32 %v657, 7
    %v659 = vsub.s32 3, %v658
    %v660 = vrot.slane %v643, %v659
    %v921 = vunpack.c.l.b16 %v387
    %v922 = vunpack.c.h.b16 %v387
    %v923 = vunpack.c.l.b16 %v388
    %v924 = vunpack.c.h.b16 %v388
    %v925 = vunpack.c.l.b16 %v389
    %v926 = vunpack.c.h.b16 %v389
    %v927 = vunpack.c.l.b16 %v390
    %v928 = vunpack.c.h.b16 %v390
    %v929 = vunpack.c.l.b16 %v391
    %v930 = vunpack.c.h.b16 %v391
    %v931 = vunpack.c.l.b16 %v392
    %v932 = vunpack.c.h.b16 %v392
    %v933 = vunpack.c.l.b16 %v393
    %v934 = vunpack.c.h.b16 %v393
    %v935 = vunpack.c.l.b16 %v394
    %v936 = vunpack.c.h.b16 %v394
    %v937 = vunpack.c.l.b16 %v395
    %v938 = vunpack.c.h.b16 %v395
    %v939 = vunpack.c.l.b16 %v396
    %v940 = vunpack.c.h.b16 %v396
    %v941 = vunpack.c.l.b16 %v397
    %v942 = vunpack.c.h.b16 %v397
    %v943 = vunpack.c.l.b16 %v398
    %v944 = vunpack.c.h.b16 %v398
    %v945 = vunpack.c.l.b16 %v399
    %v946 = vunpack.c.h.b16 %v399
    %v947 = vunpack.c.l.b16 %v400
    %v948 = vunpack.c.h.b16 %v400
    %v949 = vunpack.c.l.b16 %v401
    %v950 = vunpack.c.h.b16 %v401
    %v951 = vunpack.c.l.b16 %v402
    %v952 = vunpack.c.h.b16 %v402
    %v953 = vunpack.c.l.b16 %v403
    %v954 = vunpack.c.h.b16 %v403
    %v955 = vunpack.c.l.b16 %v404
    %v956 = vunpack.c.h.b16 %v404
    %v957 = vunpack.c.l.b16 %v405
    %v958 = vunpack.c.h.b16 %v405
    %v959 = vunpack.c.l.b16 %v406
    %v960 = vunpack.c.h.b16 %v406
    %v961 = vunpack.c.l.b16 %v407
    %v962 = vunpack.c.h.b16 %v407
    %v963 = vunpack.c.l.b16 %v408
    %v964 = vunpack.c.h.b16 %v408
    %v965 = vunpack.c.l.b16 %v409
    %v966 = vunpack.c.h.b16 %v409
    %v967 = vunpack.c.l.b16 %v410
    %v968 = vunpack.c.h.b16 %v410
    %v969 = vunpack.c.l.b16 %v411
    %v970 = vunpack.c.h.b16 %v411
    %v971 = vunpack.c.l.b16 %v412
    %v972 = vunpack.c.h.b16 %v412
    %v973 = vunpack.c.l.b16 %v413
    %v974 = vunpack.c.h.b16 %v413
    %v975 = vunpack.c.l.b16 %v414
    %v976 = vunpack.c.h.b16 %v414
    %v977 = vunpack.c.l.b16 %v415
    %v978 = vunpack.c.h.b16 %v415
    %v979 = vunpack.c.l.b16 %v416
    %v980 = vunpack.c.h.b16 %v416
    %v981 = vunpack.c.l.b16 %v417
    %v982 = vunpack.c.h.b16 %v417
    %v983 = vunpack.c.l.b16 %v418
    %v984 = vunpack.c.h.b16 %v418
    %v985 = vunpack.c.l.b16 %v419
    %v986 = vunpack.c.h.b16 %v419
    %v987 = vunpack.c.l.b16 %v420
    %v988 = vunpack.c.h.b16 %v420
    %v989 = vunpack.c.l.b16 %v421
    %v990 = vunpack.c.h.b16 %v421
    %v991 = vunpack.c.l.b16 %v422
    %v992 = vunpack.c.h.b16 %v422
    %v993 = vunpack.c.l.b16 %v423
    %v994 = vunpack.c.h.b16 %v423
    %v995 = vunpack.c.l.b16 %v424
    %v996 = vunpack.c.h.b16 %v424
    %v997 = vunpack.c.l.b16 %v425
    %v998 = vunpack.c.h.b16 %v425
    %v999 = vunpack.c.l.b16 %v426
    %v1000 = vunpack.c.h.b16 %v426
    %v1001 = vunpack.c.l.b16 %v427
    %v1002 = vunpack.c.h.b16 %v427
    %v1003 = vunpack.c.l.b16 %v428
    %v1004 = vunpack.c.h.b16 %v428
    %v1005 = vunpack.c.l.b16 %v429
    %v1006 = vunpack.c.h.b16 %v429
    %v1007 = vunpack.c.l.b16 %v430
    %v1008 = vunpack.c.h.b16 %v430
    %v1009 = vunpack.c.l.b16 %v431
    %v1010 = vunpack.c.h.b16 %v431
    %v1011 = vunpack.c.l.b16 %v432
    %v1012 = vunpack.c.h.b16 %v432
    %v1013 = vunpack.c.l.b16 %v433
    %v1014 = vunpack.c.h.b16 %v433
    %v1015 = vunpack.c.l.b16 %v434
    %v1016 = vunpack.c.h.b16 %v434
    %v1017 = vunpack.c.l.b16 %v435
    %v1018 = vunpack.c.h.b16 %v435
    %v1019 = vunpack.c.l.b16 %v436
    %v1020 = vunpack.c.h.b16 %v436
    %v1021 = vunpack.c.l.b16 %v437
    %v1022 = vunpack.c.h.b16 %v437
    %v1023 = vunpack.c.l.b16 %v438
    %v1024 = vunpack.c.h.b16 %v438
    %v1025 = vunpack.c.l.b16 %v439
    %v1026 = vunpack.c.h.b16 %v439
    %v1027 = vunpack.c.l.b16 %v440
    %v1028 = vunpack.c.h.b16 %v440
    %v1029 = vunpack.c.l.b16 %v441
    %v1030 = vunpack.c.h.b16 %v441
    %v1031 = vunpack.c.l.b16 %v442
    %v1032 = vunpack.c.h.b16 %v442
    %v1033 = vunpack.c.l.b16 %v443
    %v1034 = vunpack.c.h.b16 %v443
    %v1035 = vunpack.c.l.b16 %v444
    %v1036 = vunpack.c.h.b16 %v444
    %v1037 = vunpack.c.l.b16 %v445
    %v1038 = vunpack.c.h.b16 %v445
    %v1039 = vunpack.c.l.b16 %v446
    %v1040 = vunpack.c.h.b16 %v446
    %v1041 = vunpack.c.l.b16 %v447
    %v1042 = vunpack.c.h.b16 %v447
    %v1043 = vunpack.c.l.b16 %v448
    %v1044 = vunpack.c.h.b16 %v448
    %v1045 = vunpack.c.l.b16 %v449
    %v1046 = vunpack.c.h.b16 %v449
    %v1047 = vunpack.c.l.b16 %v450
    %v1048 = vunpack.c.h.b16 %v450
    %v1049 = vunpack.c.l.b16 %v451
    %v1050 = vunpack.c.h.b16 %v451
    %v1051 = vunpack.c.l.b16 %v452
    %v1052 = vunpack.c.h.b16 %v452
    %v1053 = vunpack.c.l.b16 %v453
    %v1054 = vunpack.c.h.b16 %v453
    %v1055 = vunpack.c.l.b16 %v454
    %v1056 = vunpack.c.h.b16 %v454
    %v1057 = vunpack.c.l.b16 %v455
    %v1058 = vunpack.c.h.b16 %v455
    %v1059 = vunpack.c.l.b16 %v456
    %v1060 = vunpack.c.h.b16 %v456
    %v1061 = vunpack.c.l.b16 %v457
    %v1062 = vunpack.c.h.b16 %v457
    %v1063 = vunpack.c.l.b16 %v458
    %v1064 = vunpack.c.h.b16 %v458
    %v1065 = vunpack.c.l.b16 %v459
    %v1066 = vunpack.c.h.b16 %v459
    %v1067 = vunpack.c.l.b16 %v460
    %v1068 = vunpack.c.h.b16 %v460
    %v1069 = vunpack.c.l.b16 %v461
    %v1070 = vunpack.c.h.b16 %v461
    %v1071 = vunpack.c.l.b16 %v462
    %v1072 = vunpack.c.h.b16 %v462
    %v1073 = vunpack.c.l.b16 %v463
    %v1074 = vunpack.c.h.b16 %v463
    %v1075 = vunpack.c.l.b16 %v464
    %v1076 = vunpack.c.h.b16 %v464
    %v1077 = vunpack.c.l.b16 %v465
    %v1078 = vunpack.c.h.b16 %v465
    %v1079 = vunpack.c.l.b16 %v466
    %v1080 = vunpack.c.h.b16 %v466
    %v1081 = vunpack.c.l.b16 %v467
    %v1082 = vunpack.c.h.b16 %v467
    %v1083 = vunpack.c.l.b16 %v468
    %v1084 = vunpack.c.h.b16 %v468
    %v1085 = vunpack.c.l.b16 %v469
    %v1086 = vunpack.c.h.b16 %v469
    %v1087 = vunpack.c.l.b16 %v470
    %v1088 = vunpack.c.h.b16 %v470
    %v1089 = vunpack.c.l.b16 %v471
    %v1090 = vunpack.c.h.b16 %v471
    %v1091 = vunpack.c.l.b16 %v472
    %v1092 = vunpack.c.h.b16 %v472
    %v1093 = vunpack.c.l.b16 %v473
    %v1094 = vunpack.c.h.b16 %v473
    %v1095 = vunpack.c.l.b16 %v474
    %v1096 = vunpack.c.h.b16 %v474
    %v1097 = vunpack.c.l.b16 %v475
    %v1098 = vunpack.c.h.b16 %v475
    %v1099 = vunpack.c.l.b16 %v476
    %v1100 = vunpack.c.h.b16 %v476
    %v1101 = vunpack.c.l.b16 %v477
    %v1102 = vunpack.c.h.b16 %v477
    %v1103 = vunpack.c.l.b16 %v478
    %v1104 = vunpack.c.h.b16 %v478
    %v1105 = vunpack.c.l.b16 %v479
    %v1106 = vunpack.c.h.b16 %v479
    %v1107 = vunpack.c.l.b16 %v480
    %v1108 = vunpack.c.h.b16 %v480
    %v1109 = vunpack.c.l.b16 %v481
    %v1110 = vunpack.c.h.b16 %v481
    %v1111 = vunpack.c.l.b16 %v482
    %v1112 = vunpack.c.h.b16 %v482
    %v1113 = vunpack.c.l.b16 %v483
    %v1114 = vunpack.c.h.b16 %v483
    %v1115 = vunpack.c.l.b16 %v484
    %v1116 = vunpack.c.h.b16 %v484
    %v1117 = vunpack.c.l.b16 %v485
    %v1118 = vunpack.c.h.b16 %v485
    %v1119 = vunpack.c.l.b16 %v486
    %v1120 = vunpack.c.h.b16 %v486
    %v1121 = vunpack.c.l.b16 %v487
    %v1122 = vunpack.c.h.b16 %v487
    %v1123 = vunpack.c.l.b16 %v488
    %v1124 = vunpack.c.h.b16 %v488
    %v1125 = vunpack.c.l.b16 %v489
    %v1126 = vunpack.c.h.b16 %v489
    %v1127 = vunpack.c.l.b16 %v490
    %v1128 = vunpack.c.h.b16 %v490
    %v1129 = vunpack.c.l.b16 %v491
    %v1130 = vunpack.c.h.b16 %v491
    %v1131 = vunpack.c.l.b16 %v492
    %v1132 = vunpack.c.h.b16 %v492
    %v1133 = vunpack.c.l.b16 %v493
    %v1134 = vunpack.c.h.b16 %v493
    %v1135 = vunpack.c.l.b16 %v494
    %v1136 = vunpack.c.h.b16 %v494
    %v1137 = vunpack.c.l.b16 %v495
    %v1138 = vunpack.c.h.b16 %v495
    %v1139 = vunpack.c.l.b16 %v496
    %v1140 = vunpack.c.h.b16 %v496
    %v1141 = vunpack.c.l.b16 %v497
    %v1142 = vunpack.c.h.b16 %v497
    %v1143 = vunpack.c.l.b16 %v498
    %v1144 = vunpack.c.h.b16 %v498
    %v1145 = vunpack.c.l.b16 %v499
    %v1146 = vunpack.c.h.b16 %v499
    %v1147 = vunpack.c.l.b16 %v500
    %v1148 = vunpack.c.h.b16 %v500
    %v1149 = vunpack.c.l.b16 %v501
    %v1150 = vunpack.c.h.b16 %v501
    %v1151 = vunpack.c.l.b16 %v502
    %v1152 = vunpack.c.h.b16 %v502
    %v1153 = vunpack.c.l.b16 %v503
    %v1154 = vunpack.c.h.b16 %v503
    %v1155 = vunpack.c.l.b16 %v504
    %v1156 = vunpack.c.h.b16 %v504
    %v1157 = vunpack.c.l.b16 %v505
    %v1158 = vunpack.c.h.b16 %v505
    %v1159 = vunpack.c.l.b16 %v506
    %v1160 = vunpack.c.h.b16 %v506
    %v1161 = vunpack.c.l.b16 %v507
    %v1162 = vunpack.c.h.b16 %v507
    %v1163 = vunpack.c.l.b16 %v508
    %v1164 = vunpack.c.h.b16 %v508
    %v1165 = vunpack.c.l.b16 %v509
    %v1166 = vunpack.c.h.b16 %v509
    %v1167 = vunpack.c.l.b16 %v510
    %v1168 = vunpack.c.h.b16 %v510
    %v1169 = vunpack.c.l.b16 %v511
    %v1170 = vunpack.c.h.b16 %v511
    %v1171 = vunpack.c.l.b16 %v512
    %v1172 = vunpack.c.h.b16 %v512
    %v1173 = vunpack.c.l.b16 %v513
    %v1174 = vunpack.c.h.b16 %v513
    %v1175 = vunpack.c.l.b16 %v514
    %v1176 = vunpack.c.h.b16 %v514
    %v1177 = vunpack.c.l.b16 %v515
    %v1178 = vunpack.c.h.b16 %v515
    %v1179 = vunpack.c.l.b16 %v516
    %v1180 = vunpack.c.h.b16 %v516
    %v1181 = vunpack.c.l.b16 %v517
    %v1182 = vunpack.c.h.b16 %v517
    %v1183 = vunpack.c.l.b16 %v518
    %v1184 = vunpack.c.h.b16 %v518
    %v1185 = vunpack.c.l.b16 %v519
    %v1186 = vunpack.c.h.b16 %v519
    %v1187 = vunpack.c.l.b16 %v520
    %v1188 = vunpack.c.h.b16 %v520
    %v1189 = vunpack.c.l.b16 %v521
    %v1190 = vunpack.c.h.b16 %v521
    %v1191 = vunpack.c.l.b16 %v522
    %v1192 = vunpack.c.h.b16 %v522
    %v1193 = vunpack.c.l.b16 %v523
    %v1194 = vunpack.c.h.b16 %v523
    %v1195 = vunpack.c.l.b16 %v524
    %v1196 = vunpack.c.h.b16 %v524
    %v1197 = vunpack.c.l.b16 %v525
    %v1198 = vunpack.c.h.b16 %v525
    %v1199 = vunpack.c.l.b16 %v526
    %v1200 = vunpack.c.h.b16 %v526
    %v1201 = vunpack.c.l.b16 %v527
    %v1202 = vunpack.c.h.b16 %v527
    %v1203 = vunpack.c.l.b16 %v528
    %v1204 = vunpack.c.h.b16 %v528
    %v1205 = vunpack.c.l.b16 %v529
    %v1206 = vunpack.c.h.b16 %v529
    %v1207 = vunpack.c.l.b16 %v530
    %v1208 = vunpack.c.h.b16 %v530
    %v1209 = vunpack.c.l.b16 %v531
    %v1210 = vunpack.c.h.b16 %v531
    %v1211 = vunpack.c.l.b16 %v532
    %v1212 = vunpack.c.h.b16 %v532
    %v1213 = vunpack.c.l.b16 %v533
    %v1214 = vunpack.c.h.b16 %v533
    %v1215 = vunpack.c.l.b16 %v534
    %v1216 = vunpack.c.h.b16 %v534
    %v1217 = vunpack.c.l.b16 %v535
    %v1218 = vunpack.c.h.b16 %v535
    %v1219 = vunpack.c.l.b16 %v536
    %v1220 = vunpack.c.h.b16 %v536
    %v1221 = vunpack.c.l.b16 %v537
    %v1222 = vunpack.c.h.b16 %v537
    %v1223 = vunpack.c.l.b16 %v538
    %v1224 = vunpack.c.h.b16 %v538
    %v1225 = vunpack.c.l.b16 %v539
    %v1226 = vunpack.c.h.b16 %v539
    %v1227 = vunpack.c.l.b16 %v540
    %v1228 = vunpack.c.h.b16 %v540
    %v1229 = vunpack.c.l.b16 %v541
    %v1230 = vunpack.c.h.b16 %v541
    %v1231 = vunpack.c.l.b16 %v542
    %v1232 = vunpack.c.h.b16 %v542
    %v1233 = vunpack.c.l.b16 %v543
    %v1234 = vunpack.c.h.b16 %v543
    %v1235 = vunpack.c.l.b16 %v544
    %v1236 = vunpack.c.h.b16 %v544
    %v1237 = vunpack.c.l.b16 %v545
    %v1238 = vunpack.c.h.b16 %v545
    %v1239 = vunpack.c.l.b16 %v546
    %v1240 = vunpack.c.h.b16 %v546
    %v1241 = vunpack.c.l.b16 %v547
    %v1242 = vunpack.c.h.b16 %v547
    %v1243 = vunpack.c.l.b16 %v548
    %v1244 = vunpack.c.h.b16 %v548
    %v1245 = vunpack.c.l.b16 %v549
    %v1246 = vunpack.c.h.b16 %v549
    %v1247 = vunpack.c.l.b16 %v550
    %v1248 = vunpack.c.h.b16 %v550
    %v1249 = vunpack.c.l.b16 %v551
    %v1250 = vunpack.c.h.b16 %v551
    %v1251 = vunpack.c.l.b16 %v552
    %v1252 = vunpack.c.h.b16 %v552
    %v1253 = vunpack.c.l.b16 %v553
    %v1254 = vunpack.c.h.b16 %v553
    %v1255 = vunpack.c.l.b16 %v554
    %v1256 = vunpack.c.h.b16 %v554
    %v1257 = vunpack.c.l.b16 %v555
    %v1258 = vunpack.c.h.b16 %v555
    %v1259 = vunpack.c.l.b16 %v556
    %v1260 = vunpack.c.h.b16 %v556
    %v1261 = vunpack.c.l.b16 %v557
    %v1262 = vunpack.c.h.b16 %v557
    %v1263 = vunpack.c.l.b16 %v558
    %v1264 = vunpack.c.h.b16 %v558
    %v1265 = vunpack.c.l.b16 %v559
    %v1266 = vunpack.c.h.b16 %v559
    %v1267 = vunpack.c.l.b16 %v560
    %v1268 = vunpack.c.h.b16 %v560
    %v1269 = vunpack.c.l.b16 %v561
    %v1270 = vunpack.c.h.b16 %v561
    %v1271 = vunpack.c.l.b16 %v562
    %v1272 = vunpack.c.h.b16 %v562
    %v1273 = vunpack.c.l.b16 %v563
    %v1274 = vunpack.c.h.b16 %v563
    %v1275 = vunpack.c.l.b16 %v564
    %v1276 = vunpack.c.h.b16 %v564
    %v1277 = vunpack.c.l.b16 %v565
    %v1278 = vunpack.c.h.b16 %v565
    %v1279 = vunpack.c.l.b16 %v566
    %v1280 = vunpack.c.h.b16 %v566
    %v1281 = vunpack.c.l.b16 %v567
    %v1282 = vunpack.c.h.b16 %v567
    %v1283 = vunpack.c.l.b16 %v568
    %v1284 = vunpack.c.h.b16 %v568
    %v1285 = vunpack.c.l.b16 %v569
    %v1286 = vunpack.c.h.b16 %v569
    %v1287 = vunpack.c.l.b16 %v570
    %v1288 = vunpack.c.h.b16 %v570
    %v1289 = vunpack.c.l.b16 %v571
    %v1290 = vunpack.c.h.b16 %v571
    %v1291 = vunpack.c.l.b16 %v572
    %v1292 = vunpack.c.h.b16 %v572
    %v1293 = vunpack.c.l.b16 %v573
    %v1294 = vunpack.c.h.b16 %v573
    %v1295 = vunpack.c.l.b16 %v574
    %v1296 = vunpack.c.h.b16 %v574
    %v1297 = vunpack.c.l.b16 %v575
    %v1298 = vunpack.c.h.b16 %v575
    %v1299 = vunpack.c.l.b16 %v576
    %v1300 = vunpack.c.h.b16 %v576
    %v1301 = vunpack.c.l.b16 %v577
    %v1302 = vunpack.c.h.b16 %v577
    %v1303 = vunpack.c.l.b16 %v578
    %v1304 = vunpack.c.h.b16 %v578
    %v1305 = vunpack.c.l.b16 %v579
    %v1306 = vunpack.c.h.b16 %v579
    %v1307 = vunpack.c.l.b16 %v580
    %v1308 = vunpack.c.h.b16 %v580
    %v1309 = vunpack.c.l.b16 %v581
    %v1310 = vunpack.c.h.b16 %v581
    %v1311 = vunpack.c.l.b16 %v582
    %v1312 = vunpack.c.h.b16 %v582
    %v1313 = vunpack.c.l.b16 %v583
    %v1314 = vunpack.c.h.b16 %v583
    %v1315 = vunpack.c.l.b16 %v584
    %v1316 = vunpack.c.h.b16 %v584
    %v1317 = vunpack.c.l.b16 %v585
    %v1318 = vunpack.c.h.b16 %v585
    %v1319 = vunpack.c.l.b16 %v586
    %v1320 = vunpack.c.h.b16 %v586
    %v1321 = vunpack.c.l.b16 %v587
    %v1322 = vunpack.c.h.b16 %v587
    %v1323 = vunpack.c.l.b16 %v588
    %v1324 = vunpack.c.h.b16 %v588
    %v1325 = vunpack.c.l.b16 %v589
    %v1326 = vunpack.c.h.b16 %v589
    %v1327 = vunpack.c.l.b16 %v590
    %v1328 = vunpack.c.h.b16 %v590
    %v1329 = vunpack.c.l.b16 %v591
    %v1330 = vunpack.c.h.b16 %v591
    %v1331 = vunpack.c.l.b16 %v592
    %v1332 = vunpack.c.h.b16 %v592
    %v1333 = vunpack.c.l.b16 %v593
    %v1334 = vunpack.c.h.b16 %v593
    %v1335 = vunpack.c.l.b16 %v594
    %v1336 = vunpack.c.h.b16 %v594
    %v1337 = vunpack.c.l.b16 %v595
    %v1338 = vunpack.c.h.b16 %v595
    %v1339 = vunpack.c.l.b16 %v596
    %v1340 = vunpack.c.h.b16 %v596
    %v1341 = vunpack.c.l.b16 %v597
    %v1342 = vunpack.c.h.b16 %v597
    %v1343 = vunpack.c.l.b16 %v598
    %v1344 = vunpack.c.h.b16 %v598
    %v1345 = vunpack.c.l.b16 %v599
    %v1346 = vunpack.c.h.b16 %v599
    %v1347 = vunpack.c.l.b16 %v600
    %v1348 = vunpack.c.h.b16 %v600
    %v1349 = vunpack.c.l.b16 %v601
    %v1350 = vunpack.c.h.b16 %v601
    %v1351 = vunpack.c.l.b16 %v602
    %v1352 = vunpack.c.h.b16 %v602
    %v1353 = vunpack.c.l.b16 %v603
    %v1354 = vunpack.c.h.b16 %v603
    %v1355 = vunpack.c.l.b16 %v604
    %v1356 = vunpack.c.h.b16 %v604
    %v1357 = vunpack.c.l.b16 %v605
    %v1358 = vunpack.c.h.b16 %v605
    %v1359 = vunpack.c.l.b16 %v606
    %v1360 = vunpack.c.h.b16 %v606
    %v1361 = vunpack.c.l.b16 %v607
    %v1362 = vunpack.c.h.b16 %v607
    %v1363 = vunpack.c.l.b16 %v608
    %v1364 = vunpack.c.h.b16 %v608
    %v1365 = vunpack.c.l.b16 %v609
    %v1366 = vunpack.c.h.b16 %v609
    %v1367 = vunpack.c.l.b16 %v610
    %v1368 = vunpack.c.h.b16 %v610
    %v1369 = vunpack.c.l.b16 %v611
    %v1370 = vunpack.c.h.b16 %v611
    %v1371 = vunpack.c.l.b16 %v612
    %v1372 = vunpack.c.h.b16 %v612
    %v1373 = vunpack.c.l.b16 %v613
    %v1374 = vunpack.c.h.b16 %v613
    %v1375 = vunpack.c.l.b16 %v614
    %v1376 = vunpack.c.h.b16 %v614
    %v1377 = vunpack.c.l.b16 %v615
    %v1378 = vunpack.c.h.b16 %v615
    %v1379 = vunpack.c.l.b16 %v616
    %v1380 = vunpack.c.h.b16 %v616
    %v1381 = vunpack.c.l.b16 %v617
    %v1382 = vunpack.c.h.b16 %v617
    %v1383 = vunpack.c.l.b16 %v618
    %v1384 = vunpack.c.h.b16 %v618
    %v1385 = vunpack.c.l.b16 %v619
    %v1386 = vunpack.c.h.b16 %v619
    %v1387 = vunpack.c.l.b16 %v620
    %v1388 = vunpack.c.h.b16 %v620
    %v1389 = vunpack.c.l.b16 %v621
    %v1390 = vunpack.c.h.b16 %v621
    %v1391 = vunpack.c.l.b16 %v622
    %v1392 = vunpack.c.h.b16 %v622
    %v1393 = vunpack.c.l.b16 %v623
    %v1394 = vunpack.c.h.b16 %v623
    %v1395 = vunpack.c.l.b16 %v624
    %v1396 = vunpack.c.h.b16 %v624
    %v1397 = vunpack.c.l.b16 %v625
    %v1398 = vunpack.c.h.b16 %v625
    %v1399 = vunpack.c.l.b16 %v626
    %v1400 = vunpack.c.h.b16 %v626
    %v1401 = vunpack.c.l.b16 %v627
    %v1402 = vunpack.c.h.b16 %v627
    %v1403 = vunpack.c.l.b16 %v628
    %v1404 = vunpack.c.h.b16 %v628
    %v1405 = vunpack.c.l.b16 %v629
    %v1406 = vunpack.c.h.b16 %v629
    %v1407 = vunpack.c.l.b16 %v630
    %v1408 = vunpack.c.h.b16 %v630
    %v1409 = vunpack.c.l.b16 %v631
    %v1410 = vunpack.c.h.b16 %v631
    %v1411 = vunpack.c.l.b16 %v632
    %v1412 = vunpack.c.h.b16 %v632
    %v1413 = vunpack.c.l.b16 %v633
    %v1414 = vunpack.c.h.b16 %v633
    %v1415 = vunpack.c.l.b16 %v634
    %v1416 = vunpack.c.h.b16 %v634
    %v1417 = vunpack.c.l.b16 %v635
    %v1418 = vunpack.c.h.b16 %v635
    %v1419 = vunpack.c.l.b16 %v636
    %v1420 = vunpack.c.h.b16 %v636
    %v1421 = vunpack.c.l.b16 %v637
    %v1422 = vunpack.c.h.b16 %v637
    %v1423 = vunpack.c.l.b16 %v638
    %v1424 = vunpack.c.h.b16 %v638
    %v1425 = vunpack.c.l.b16 %v639
    %v1426 = vunpack.c.h.b16 %v639
    %v1427 = vunpack.c.l.b16 %v640
    %v1428 = vunpack.c.h.b16 %v640
    %v1429 = vunpack.c.l.b16 %v641
    %v1430 = vunpack.c.h.b16 %v641
    %v1431 = vunpack.c.l.b16 %v642
    %v1432 = vunpack.c.h.b16 %v642
    %v1433 = vpack.c.b16 %v925, %v921
    %v1434 = vpack.c.b16 %v926, %v922
    %v1435 = vpack.c.b16 %v927, %v923
    %v1436 = vpack.c.b16 %v928, %v924
    %v1437 = vpack.c.b16 %v933, %v929
    %v1438 = vpack.c.b16 %v934, %v930
    %v1439 = vpack.c.b16 %v935, %v931
    %v1440 = vpack.c.b16 %v936, %v932
    %v1441 = vpack.c.b16 %v941, %v937
    %v1442 = vpack.c.b16 %v942, %v938
    %v1443 = vpack.c.b16 %v943, %v939
    %v1444 = vpack.c.b16 %v944, %v940
    %v1445 = vpack.c.b16 %v949, %v945
    %v1446 = vpack.c.b16 %v950, %v946
    %v1447 = vpack.c.b16 %v951, %v947
    %v1448 = vpack.c.b16 %v952, %v948
    %v1449 = vpack.c.b16 %v957, %v953
    %v1450 = vpack.c.b16 %v958, %v954
    %v1451 = vpack.c.b16 %v959, %v955
    %v1452 = vpack.c.b16 %v960, %v956
    %v1453 = vpack.c.b16 %v965, %v961
    %v1454 = vpack.c.b16 %v966, %v962
    %v1455 = vpack.c.b16 %v967, %v963
    %v1456 = vpack.c.b16 %v968, %v964
    %v1457 = vpack.c.b16 %v973, %v969
    %v1458 = vpack.c.b16 %v974, %v970
    %v1459 = vpack.c.b16 %v975, %v971
    %v1460 = vpack.c.b16 %v976, %v972
    %v1461 = vpack.c.b16 %v981, %v977
    %v1462 = vpack.c.b16 %v982, %v978
    %v1463 = vpack.c.b16 %v983, %v979
    %v1464 = vpack.c.b16 %v984, %v980
    %v1465 = vpack.c.b16 %v989, %v985
    %v1466 = vpack.c.b16 %v990, %v986
    %v1467 = vpack.c.b16 %v991, %v987
    %v1468 = vpack.c.b16 %v992, %v988
    %v1469 = vpack.c.b16 %v997, %v993
    %v1470 = vpack.c.b16 %v998, %v994
    %v1471 = vpack.c.b16 %v999, %v995
    %v1472 = vpack.c.b16 %v1000, %v996
    %v1473 = vpack.c.b16 %v1005, %v1001
    %v1474 = vpack.c.b16 %v1006, %v1002
    %v1475 = vpack.c.b16 %v1007, %v1003
    %v1476 = vpack.c.b16 %v1008, %v1004
    %v1477 = vpack.c.b16 %v1013, %v1009
    %v1478 = vpack.c.b16 %v1014, %v1010
    %v1479 = vpack.c.b16 %v1015, %v1011
    %v1480 = vpack.c.b16 %v1016, %v1012
    %v1481 = vpack.c.b16 %v1021, %v1017
    %v1482 = vpack.c.b16 %v1022, %v1018
    %v1483 = vpack.c.b16 %v1023, %v1019
    %v1484 = vpack.c.b16 %v1024, %v1020
    %v1485 = vpack.c.b16 %v1029, %v1025
    %v1486 = vpack.c.b16 %v1030, %v1026
    %v1487 = vpack.c.b16 %v1031, %v1027
    %v1488 = vpack.c.b16 %v1032, %v1028
    %v1489 = vpack.c.b16 %v1037, %v1033
    %v1490 = vpack.c.b16 %v1038, %v1034
    %v1491 = vpack.c.b16 %v1039, %v1035
    %v1492 = vpack.c.b16 %v1040, %v1036
    %v1493 = vpack.c.b16 %v1045, %v1041
    %v1494 = vpack.c.b16 %v1046, %v1042
    %v1495 = vpack.c.b16 %v1047, %v1043
    %v1496 = vpack.c.b16 %v1048, %v1044
    %v1497 = vpack.c.b16 %v1053, %v1049
    %v1498 = vpack.c.b16 %v1054, %v1050
    %v1499 = vpack.c.b16 %v1055, %v1051
    %v1500 = vpack.c.b16 %v1056, %v1052
    %v1501 = vpack.c.b16 %v1061, %v1057
    %v1502 = vpack.c.b16 %v1062, %v1058
    %v1503 = vpack.c.b16 %v1063, %v1059
    %v1504 = vpack.c.b16 %v1064, %v1060
    %v1505 = vpack.c.b16 %v1069, %v1065
    %v1506 = vpack.c.b16 %v1070, %v1066
    %v1507 = vpack.c.b16 %v1071, %v1067
    %v1508 = vpack.c.b16 %v1072, %v1068
    %v1509 = vpack.c.b16 %v1077, %v1073
    %v1510 = vpack.c.b16 %v1078, %v1074
    %v1511 = vpack.c.b16 %v1079, %v1075
    %v1512 = vpack.c.b16 %v1080, %v1076
    %v1513 = vpack.c.b16 %v1085, %v1081
    %v1514 = vpack.c.b16 %v1086, %v1082
    %v1515 = vpack.c.b16 %v1087, %v1083
    %v1516 = vpack.c.b16 %v1088, %v1084
    %v1517 = vpack.c.b16 %v1093, %v1089
    %v1518 = vpack.c.b16 %v1094, %v1090
    %v1519 = vpack.c.b16 %v1095, %v1091
    %v1520 = vpack.c.b16 %v1096, %v1092
    %v1521 = vpack.c.b16 %v1101, %v1097
    %v1522 = vpack.c.b16 %v1102, %v1098
    %v1523 = vpack.c.b16 %v1103, %v1099
    %v1524 = vpack.c.b16 %v1104, %v1100
    %v1525 = vpack.c.b16 %v1109, %v1105
    %v1526 = vpack.c.b16 %v1110, %v1106
    %v1527 = vpack.c.b16 %v1111, %v1107
    %v1528 = vpack.c.b16 %v1112, %v1108
    %v1529 = vpack.c.b16 %v1117, %v1113
    %v1530 = vpack.c.b16 %v1118, %v1114
    %v1531 = vpack.c.b16 %v1119, %v1115
    %v1532 = vpack.c.b16 %v1120, %v1116
    %v1533 = vpack.c.b16 %v1125, %v1121
    %v1534 = vpack.c.b16 %v1126, %v1122
    %v1535 = vpack.c.b16 %v1127, %v1123
    %v1536 = vpack.c.b16 %v1128, %v1124
    %v1537 = vpack.c.b16 %v1133, %v1129
    %v1538 = vpack.c.b16 %v1134, %v1130
    %v1539 = vpack.c.b16 %v1135, %v1131
    %v1540 = vpack.c.b16 %v1136, %v1132
    %v1541 = vpack.c.b16 %v1141, %v1137
    %v1542 = vpack.c.b16 %v1142, %v1138
    %v1543 = vpack.c.b16 %v1143, %v1139
    %v1544 = vpack.c.b16 %v1144, %v1140
    %v1545 = vpack.c.b16 %v1149, %v1145
    %v1546 = vpack.c.b16 %v1150, %v1146
    %v1547 = vpack.c.b16 %v1151, %v1147
    %v1548 = vpack.c.b16 %v1152, %v1148
    %v1549 = vpack.c.b16 %v1157, %v1153
    %v1550 = vpack.c.b16 %v1158, %v1154
    %v1551 = vpack.c.b16 %v1159, %v1155
    %v1552 = vpack.c.b16 %v1160, %v1156
    %v1553 = vpack.c.b16 %v1165, %v1161
    %v1554 = vpack.c.b16 %v1166, %v1162
    %v1555 = vpack.c.b16 %v1167, %v1163
    %v1556 = vpack.c.b16 %v1168, %v1164
    %v1557 = vpack.c.b16 %v1173, %v1169
    %v1558 = vpack.c.b16 %v1174, %v1170
    %v1559 = vpack.c.b16 %v1175, %v1171
    %v1560 = vpack.c.b16 %v1176, %v1172
    %v1561 = vpack.c.b16 %v1181, %v1177
    %v1562 = vpack.c.b16 %v1182, %v1178
    %v1563 = vpack.c.b16 %v1183, %v1179
    %v1564 = vpack.c.b16 %v1184, %v1180
    %v1565 = vpack.c.b16 %v1189, %v1185
    %v1566 = vpack.c.b16 %v1190, %v1186
    %v1567 = vpack.c.b16 %v1191, %v1187
    %v1568 = vpack.c.b16 %v1192, %v1188
    %v1569 = vpack.c.b16 %v1197, %v1193
    %v1570 = vpack.c.b16 %v1198, %v1194
    %v1571 = vpack.c.b16 %v1199, %v1195
    %v1572 = vpack.c.b16 %v1200, %v1196
    %v1573 = vpack.c.b16 %v1205, %v1201
    %v1574 = vpack.c.b16 %v1206, %v1202
    %v1575 = vpack.c.b16 %v1207, %v1203
    %v1576 = vpack.c.b16 %v1208, %v1204
    %v1577 = vpack.c.b16 %v1213, %v1209
    %v1578 = vpack.c.b16 %v1214, %v1210
    %v1579 = vpack.c.b16 %v1215, %v1211
    %v1580 = vpack.c.b16 %v1216, %v1212
    %v1581 = vpack.c.b16 %v1221, %v1217
    %v1582 = vpack.c.b16 %v1222, %v1218
    %v1583 = vpack.c.b16 %v1223, %v1219
    %v1584 = vpack.c.b16 %v1224, %v1220
    %v1585 = vpack.c.b16 %v1229, %v1225
    %v1586 = vpack.c.b16 %v1230, %v1226
    %v1587 = vpack.c.b16 %v1231, %v1227
    %v1588 = vpack.c.b16 %v1232, %v1228
    %v1589 = vpack.c.b16 %v1237, %v1233
    %v1590 = vpack.c.b16 %v1238, %v1234
    %v1591 = vpack.c.b16 %v1239, %v1235
    %v1592 = vpack.c.b16 %v1240, %v1236
    %v1593 = vpack.c.b16 %v1245, %v1241
    %v1594 = vpack.c.b16 %v1246, %v1242
    %v1595 = vpack.c.b16 %v1247, %v1243
    %v1596 = vpack.c.b16 %v1248, %v1244
    %v1597 = vpack.c.b16 %v1253, %v1249
    %v1598 = vpack.c.b16 %v1254, %v1250
    %v1599 = vpack.c.b16 %v1255, %v1251
    %v1600 = vpack.c.b16 %v1256, %v1252
    %v1601 = vpack.c.b16 %v1261, %v1257
    %v1602 = vpack.c.b16 %v1262, %v1258
    %v1603 = vpack.c.b16 %v1263, %v1259
    %v1604 = vpack.c.b16 %v1264, %v1260
    %v1605 = vpack.c.b16 %v1269, %v1265
    %v1606 = vpack.c.b16 %v1270, %v1266
    %v1607 = vpack.c.b16 %v1271, %v1267
    %v1608 = vpack.c.b16 %v1272, %v1268
    %v1609 = vpack.c.b16 %v1277, %v1273
    %v1610 = vpack.c.b16 %v1278, %v1274
    %v1611 = vpack.c.b16 %v1279, %v1275
    %v1612 = vpack.c.b16 %v1280, %v1276
    %v1613 = vpack.c.b16 %v1285, %v1281
    %v1614 = vpack.c.b16 %v1286, %v1282
    %v1615 = vpack.c.b16 %v1287, %v1283
    %v1616 = vpack.c.b16 %v1288, %v1284
    %v1617 = vpack.c.b16 %v1293, %v1289
    %v1618 = vpack.c.b16 %v1294, %v1290
    %v1619 = vpack.c.b16 %v1295, %v1291
    %v1620 = vpack.c.b16 %v1296, %v1292
    %v1621 = vpack.c.b16 %v1301, %v1297
    %v1622 = vpack.c.b16 %v1302, %v1298
    %v1623 = vpack.c.b16 %v1303, %v1299
    %v1624 = vpack.c.b16 %v1304, %v1300
    %v1625 = vpack.c.b16 %v1309, %v1305
    %v1626 = vpack.c.b16 %v1310, %v1306
    %v1627 = vpack.c.b16 %v1311, %v1307
    %v1628 = vpack.c.b16 %v1312, %v1308
    %v1629 = vpack.c.b16 %v1317, %v1313
    %v1630 = vpack.c.b16 %v1318, %v1314
    %v1631 = vpack.c.b16 %v1319, %v1315
    %v1632 = vpack.c.b16 %v1320, %v1316
    %v1633 = vpack.c.b16 %v1325, %v1321
    %v1634 = vpack.c.b16 %v1326, %v1322
    %v1635 = vpack.c.b16 %v1327, %v1323
    %v1636 = vpack.c.b16 %v1328, %v1324
    %v1637 = vpack.c.b16 %v1333, %v1329
    %v1638 = vpack.c.b16 %v1334, %v1330
    %v1639 = vpack.c.b16 %v1335, %v1331
    %v1640 = vpack.c.b16 %v1336, %v1332
    %v1641 = vpack.c.b16 %v1341, %v1337
    %v1642 = vpack.c.b16 %v1342, %v1338
    %v1643 = vpack.c.b16 %v1343, %v1339
    %v1644 = vpack.c.b16 %v1344, %v1340
    %v1645 = vpack.c.b16 %v1349, %v1345
    %v1646 = vpack.c.b16 %v1350, %v1346
    %v1647 = vpack.c.b16 %v1351, %v1347
    %v1648 = vpack.c.b16 %v1352, %v1348
    %v1649 = vpack.c.b16 %v1357, %v1353
    %v1650 = vpack.c.b16 %v1358, %v1354
    %v1651 = vpack.c.b16 %v1359, %v1355
    %v1652 = vpack.c.b16 %v1360, %v1356
    %v1653 = vpack.c.b16 %v1365, %v1361
    %v1654 = vpack.c.b16 %v1366, %v1362
    %v1655 = vpack.c.b16 %v1367, %v1363
    %v1656 = vpack.c.b16 %v1368, %v1364
    %v1657 = vpack.c.b16 %v1373, %v1369
    %v1658 = vpack.c.b16 %v1374, %v1370
    %v1659 = vpack.c.b16 %v1375, %v1371
    %v1660 = vpack.c.b16 %v1376, %v1372
    %v1661 = vpack.c.b16 %v1381, %v1377
    %v1662 = vpack.c.b16 %v1382, %v1378
    %v1663 = vpack.c.b16 %v1383, %v1379
    %v1664 = vpack.c.b16 %v1384, %v1380
    %v1665 = vpack.c.b16 %v1389, %v1385
    %v1666 = vpack.c.b16 %v1390, %v1386
    %v1667 = vpack.c.b16 %v1391, %v1387
    %v1668 = vpack.c.b16 %v1392, %v1388
    %v1669 = vpack.c.b16 %v1397, %v1393
    %v1670 = vpack.c.b16 %v1398, %v1394
    %v1671 = vpack.c.b16 %v1399, %v1395
    %v1672 = vpack.c.b16 %v1400, %v1396
    %v1673 = vpack.c.b16 %v1405, %v1401
    %v1674 = vpack.c.b16 %v1406, %v1402
    %v1675 = vpack.c.b16 %v1407, %v1403
    %v1676 = vpack.c.b16 %v1408, %v1404
    %v1677 = vpack.c.b16 %v1413, %v1409
    %v1678 = vpack.c.b16 %v1414, %v1410
    %v1679 = vpack.c.b16 %v1415, %v1411
    %v1680 = vpack.c.b16 %v1416, %v1412
    %v1681 = vpack.c.b16 %v1421, %v1417
    %v1682 = vpack.c.b16 %v1422, %v1418
    %v1683 = vpack.c.b16 %v1423, %v1419
    %v1684 = vpack.c.b16 %v1424, %v1420
    %v1685 = vpack.c.b16 %v1429, %v1425
    %v1686 = vpack.c.b16 %v1430, %v1426
    %v1687 = vpack.c.b16 %v1431, %v1427
    %v1688 = vpack.c.b16 %v1432, %v1428
    %1945 = vmatprep.subr.bf16.mxu0 %v1434
    %1946 = vmatpush1.bf16.msra.mxu0 %v1433
    %1947 = vmatprep.subr.bf16.mxu0 %v1438
    %1948 = vmatpush1.bf16.msra.mxu0 %v1437
    %1949 = vmatprep.subr.bf16.mxu0 %v1442
    %1950 = vmatpush1.bf16.msra.mxu0 %v1441
    %1951 = vmatprep.subr.bf16.mxu0 %v1446
    %1952 = vmatpush1.bf16.msra.mxu0 %v1445
    %1953 = vmatprep.subr.bf16.mxu0 %v1450
    %1954 = vmatpush1.bf16.msra.mxu0 %v1449
    %1955 = vmatprep.subr.bf16.mxu0 %v1454
    %1956 = vmatpush1.bf16.msra.mxu0 %v1453
    %1957 = vmatprep.subr.bf16.mxu0 %v1458
    %1958 = vmatpush1.bf16.msra.mxu0 %v1457
    %1959 = vmatprep.subr.bf16.mxu0 %v1462
    %1960 = vmatpush1.bf16.msra.mxu0 %v1461
    %1961 = vmatprep.subr.bf16.mxu0 %v1466
    %1962 = vmatpush1.bf16.msra.mxu0 %v1465
    %1963 = vmatprep.subr.bf16.mxu0 %v1470
    %1964 = vmatpush1.bf16.msra.mxu0 %v1469
    %1965 = vmatprep.subr.bf16.mxu0 %v1474
    %1966 = vmatpush1.bf16.msra.mxu0 %v1473
    %1967 = vmatprep.subr.bf16.mxu0 %v1478
    %1968 = vmatpush1.bf16.msra.mxu0 %v1477
    %1969 = vmatprep.subr.bf16.mxu0 %v1482
    %1970 = vmatpush1.bf16.msra.mxu0 %v1481
    %1971 = vmatprep.subr.bf16.mxu0 %v1486
    %1972 = vmatpush1.bf16.msra.mxu0 %v1485
    %1973 = vmatprep.subr.bf16.mxu0 %v1490
    %1974 = vmatpush1.bf16.msra.mxu0 %v1489
    %1975 = vmatprep.subr.bf16.mxu0 %v1494
    %1976 = vmatpush1.bf16.msra.mxu0 %v1493
    %1977 = vmatprep.mubr.bf16.mxu0 %v380
    %1978 = vmatmul.mubr.bf16.gmra.mrb[0].mxu0 %v379
    %v1979 = vpop.f32.mrb[0].mxu0
    %v1980 = vadd.f32 %v648, %v1979
    %v1981 = vpop.f32.mrb[0].mxu0
    %v1982 = vadd.f32 %v652, %v1981
    %v1983 = vpop.f32.mrb[0].mxu0
    %v1984 = vpop.f32.mrb[0].mxu0
    %1985 = vdwg.mxu0
    %1986 = vmatprep.subr.bf16.mxu0 %v1498
    %1987 = vmatpush1.bf16.msra.mxu0 %v1497
    %1988 = vmatprep.subr.bf16.mxu0 %v1502
    %1989 = vmatpush1.bf16.msra.mxu0 %v1501
    %1990 = vmatprep.subr.bf16.mxu0 %v1506
    %1991 = vmatpush1.bf16.msra.mxu0 %v1505
    %1992 = vmatprep.subr.bf16.mxu0 %v1510
    %1993 = vmatpush1.bf16.msra.mxu0 %v1509
    %1994 = vmatprep.subr.bf16.mxu0 %v1514
    %1995 = vmatpush1.bf16.msra.mxu0 %v1513
    %1996 = vmatprep.subr.bf16.mxu0 %v1518
    %1997 = vmatpush1.bf16.msra.mxu0 %v1517
    %1998 = vmatprep.subr.bf16.mxu0 %v1522
    %1999 = vmatpush1.bf16.msra.mxu0 %v1521
    %2000 = vmatprep.subr.bf16.mxu0 %v1526
    %2001 = vmatpush1.bf16.msra.mxu0 %v1525
    %2002 = vmatprep.subr.bf16.mxu0 %v1530
    %2003 = vmatpush1.bf16.msra.mxu0 %v1529
    %2004 = vmatprep.subr.bf16.mxu0 %v1534
    %2005 = vmatpush1.bf16.msra.mxu0 %v1533
    %2006 = vmatprep.subr.bf16.mxu0 %v1538
    %2007 = vmatpush1.bf16.msra.mxu0 %v1537
    %2008 = vmatprep.subr.bf16.mxu0 %v1542
    %2009 = vmatpush1.bf16.msra.mxu0 %v1541
    %2010 = vmatprep.subr.bf16.mxu0 %v1546
    %2011 = vmatpush1.bf16.msra.mxu0 %v1545
    %2012 = vmatprep.subr.bf16.mxu0 %v1550
    %2013 = vmatpush1.bf16.msra.mxu0 %v1549
    %2014 = vmatprep.subr.bf16.mxu0 %v1554
    %2015 = vmatpush1.bf16.msra.mxu0 %v1553
    %2016 = vmatprep.subr.bf16.mxu0 %v1558
    %2017 = vmatpush1.bf16.msra.mxu0 %v1557
    %2018 = vmatprep.mubr.bf16.mxu0 %v382
    %2019 = vmatmul.mubr.bf16.gmra.mrb[0].mxu0 %v381
    %v2020 = vpop.f32.mrb[0].mxu0
    %v2021 = vadd.f32 %v1980, %v2020
    %v2022 = vpop.f32.mrb[0].mxu0
    %v2023 = vadd.f32 %v1982, %v2022
    %v2024 = vpop.f32.mrb[0].mxu0
    %v2025 = vpop.f32.mrb[0].mxu0
    %2026 = vdwg.mxu0
    %2027 = vmatprep.subr.bf16.mxu0 %v1562
    %2028 = vmatpush1.bf16.msra.mxu0 %v1561
    %2029 = vmatprep.subr.bf16.mxu0 %v1566
    %2030 = vmatpush1.bf16.msra.mxu0 %v1565
    %2031 = vmatprep.subr.bf16.mxu0 %v1570
    %2032 = vmatpush1.bf16.msra.mxu0 %v1569
    %2033 = vmatprep.subr.bf16.mxu0 %v1574
    %2034 = vmatpush1.bf16.msra.mxu0 %v1573
    %2035 = vmatprep.subr.bf16.mxu0 %v1578
    %2036 = vmatpush1.bf16.msra.mxu0 %v1577
    %2037 = vmatprep.subr.bf16.mxu0 %v1582
    %2038 = vmatpush1.bf16.msra.mxu0 %v1581
    %2039 = vmatprep.subr.bf16.mxu0 %v1586
    %2040 = vmatpush1.bf16.msra.mxu0 %v1585
    %2041 = vmatprep.subr.bf16.mxu0 %v1590
    %2042 = vmatpush1.bf16.msra.mxu0 %v1589
    %2043 = vmatprep.subr.bf16.mxu0 %v1594
    %2044 = vmatpush1.bf16.msra.mxu0 %v1593
    %2045 = vmatprep.subr.bf16.mxu0 %v1598
    %2046 = vmatpush1.bf16.msra.mxu0 %v1597
    %2047 = vmatprep.subr.bf16.mxu0 %v1602
    %2048 = vmatpush1.bf16.msra.mxu0 %v1601
    %2049 = vmatprep.subr.bf16.mxu0 %v1606
    %2050 = vmatpush1.bf16.msra.mxu0 %v1605
    %2051 = vmatprep.subr.bf16.mxu0 %v1610
    %2052 = vmatpush1.bf16.msra.mxu0 %v1609
    %2053 = vmatprep.subr.bf16.mxu0 %v1614
    %2054 = vmatpush1.bf16.msra.mxu0 %v1613
    %2055 = vmatprep.subr.bf16.mxu0 %v1618
    %2056 = vmatpush1.bf16.msra.mxu0 %v1617
    %2057 = vmatprep.subr.bf16.mxu0 %v1622
    %2058 = vmatpush1.bf16.msra.mxu0 %v1621
    %2059 = vmatprep.mubr.bf16.mxu0 %v384
    %2060 = vmatmul.mubr.bf16.gmra.mrb[0].mxu0 %v383
    %v2061 = vpop.f32.mrb[0].mxu0
    %v2062 = vadd.f32 %v2021, %v2061
    %v2063 = vpop.f32.mrb[0].mxu0
    %v2064 = vadd.f32 %v2023, %v2063
    %v2065 = vpop.f32.mrb[0].mxu0
    %v2066 = vpop.f32.mrb[0].mxu0
    %2067 = vdwg.mxu0
    %2068 = vmatprep.subr.bf16.mxu0 %v1626
    %2069 = vmatpush1.bf16.msra.mxu0 %v1625
    %2070 = vmatprep.subr.bf16.mxu0 %v1630
    %2071 = vmatpush1.bf16.msra.mxu0 %v1629
    %2072 = vmatprep.subr.bf16.mxu0 %v1634
    %2073 = vmatpush1.bf16.msra.mxu0 %v1633
    %2074 = vmatprep.subr.bf16.mxu0 %v1638
    %2075 = vmatpush1.bf16.msra.mxu0 %v1637
    %2076 = vmatprep.subr.bf16.mxu0 %v1642
    %2077 = vmatpush1.bf16.msra.mxu0 %v1641
    %2078 = vmatprep.subr.bf16.mxu0 %v1646
    %2079 = vmatpush1.bf16.msra.mxu0 %v1645
    %2080 = vmatprep.subr.bf16.mxu0 %v1650
    %2081 = vmatpush1.bf16.msra.mxu0 %v1649
    %2082 = vmatprep.subr.bf16.mxu0 %v1654
    %2083 = vmatpush1.bf16.msra.mxu0 %v1653
    %2084 = vmatprep.subr.bf16.mxu0 %v1658
    %2085 = vmatpush1.bf16.msra.mxu0 %v1657
    %2086 = vmatprep.subr.bf16.mxu0 %v1662
    %2087 = vmatpush1.bf16.msra.mxu0 %v1661
    %2088 = vmatprep.subr.bf16.mxu0 %v1666
    %2089 = vmatpush1.bf16.msra.mxu0 %v1665
    %2090 = vmatprep.subr.bf16.mxu0 %v1670
    %2091 = vmatpush1.bf16.msra.mxu0 %v1669
    %2092 = vmatprep.subr.bf16.mxu0 %v1674
    %2093 = vmatpush1.bf16.msra.mxu0 %v1673
    %2094 = vmatprep.subr.bf16.mxu0 %v1678
    %2095 = vmatpush1.bf16.msra.mxu0 %v1677
    %2096 = vmatprep.subr.bf16.mxu0 %v1682
    %2097 = vmatpush1.bf16.msra.mxu0 %v1681
    %2098 = vmatprep.subr.bf16.mxu0 %v1686
    %2099 = vmatpush1.bf16.msra.mxu0 %v1685
    %2100 = vmatprep.mubr.bf16.mxu0 %v386
    %2101 = vmatmul.mubr.bf16.gmra.mrb[0].mxu0 %v385
    %v2102 = vpop.f32.mrb[0].mxu0
    %v2103 = vadd.f32 %v2062, %v2102
    %v2104 = vpop.f32.mrb[0].mxu0
    %v2105 = vadd.f32 %v2064, %v2104
    %v2106 = vpop.f32.mrb[0].mxu0
    %v2107 = vpop.f32.mrb[0].mxu0
    %2108 = vdwg.mxu0
    %2109 = vmatprep.subr.bf16.mxu0 %v1436
    %2110 = vmatpush1.bf16.msra.mxu0 %v1435
    %2111 = vmatprep.subr.bf16.mxu0 %v1440
    %2112 = vmatpush1.bf16.msra.mxu0 %v1439
    %2113 = vmatprep.subr.bf16.mxu0 %v1444
    %2114 = vmatpush1.bf16.msra.mxu0 %v1443
    %2115 = vmatprep.subr.bf16.mxu0 %v1448
    %2116 = vmatpush1.bf16.msra.mxu0 %v1447
    %2117 = vmatprep.subr.bf16.mxu0 %v1452
    %2118 = vmatpush1.bf16.msra.mxu0 %v1451
    %2119 = vmatprep.subr.bf16.mxu0 %v1456
    %2120 = vmatpush1.bf16.msra.mxu0 %v1455
    %2121 = vmatprep.subr.bf16.mxu0 %v1460
    %2122 = vmatpush1.bf16.msra.mxu0 %v1459
    %2123 = vmatprep.subr.bf16.mxu0 %v1464
    %2124 = vmatpush1.bf16.msra.mxu0 %v1463
    %2125 = vmatprep.subr.bf16.mxu0 %v1468
    %2126 = vmatpush1.bf16.msra.mxu0 %v1467
    %2127 = vmatprep.subr.bf16.mxu0 %v1472
    %2128 = vmatpush1.bf16.msra.mxu0 %v1471
    %2129 = vmatprep.subr.bf16.mxu0 %v1476
    %2130 = vmatpush1.bf16.msra.mxu0 %v1475
    %2131 = vmatprep.subr.bf16.mxu0 %v1480
    %2132 = vmatpush1.bf16.msra.mxu0 %v1479
    %2133 = vmatprep.subr.bf16.mxu0 %v1484
    %2134 = vmatpush1.bf16.msra.mxu0 %v1483
    %2135 = vmatprep.subr.bf16.mxu0 %v1488
    %2136 = vmatpush1.bf16.msra.mxu0 %v1487
    %2137 = vmatprep.subr.bf16.mxu0 %v1492
    %2138 = vmatpush1.bf16.msra.mxu0 %v1491
    %2139 = vmatprep.subr.bf16.mxu0 %v1496
    %2140 = vmatpush1.bf16.msra.mxu0 %v1495
    %2141 = vmatprep.mubr.bf16.mxu0 %v380
    %2142 = vmatmul.mubr.bf16.gmra.mrb[0].mxu0 %v379
    %v2143 = vpop.f32.mrb[0].mxu0
    %v2144 = vadd.f32 %v656, %v2143
    %v2145 = vpop.f32.mrb[0].mxu0
    %v2146 = vadd.f32 %v660, %v2145
    %v2147 = vpop.f32.mrb[0].mxu0
    %v2148 = vpop.f32.mrb[0].mxu0
    %2149 = vdwg.mxu0
    %2150 = vmatprep.subr.bf16.mxu0 %v1500
    %2151 = vmatpush1.bf16.msra.mxu0 %v1499
    %2152 = vmatprep.subr.bf16.mxu0 %v1504
    %2153 = vmatpush1.bf16.msra.mxu0 %v1503
    %2154 = vmatprep.subr.bf16.mxu0 %v1508
    %2155 = vmatpush1.bf16.msra.mxu0 %v1507
    %2156 = vmatprep.subr.bf16.mxu0 %v1512
    %2157 = vmatpush1.bf16.msra.mxu0 %v1511
    %2158 = vmatprep.subr.bf16.mxu0 %v1516
    %2159 = vmatpush1.bf16.msra.mxu0 %v1515
    %2160 = vmatprep.subr.bf16.mxu0 %v1520
    %2161 = vmatpush1.bf16.msra.mxu0 %v1519
    %2162 = vmatprep.subr.bf16.mxu0 %v1524
    %2163 = vmatpush1.bf16.msra.mxu0 %v1523
    %2164 = vmatprep.subr.bf16.mxu0 %v1528
    %2165 = vmatpush1.bf16.msra.mxu0 %v1527
    %2166 = vmatprep.subr.bf16.mxu0 %v1532
    %2167 = vmatpush1.bf16.msra.mxu0 %v1531
    %2168 = vmatprep.subr.bf16.mxu0 %v1536
    %2169 = vmatpush1.bf16.msra.mxu0 %v1535
    %2170 = vmatprep.subr.bf16.mxu0 %v1540
    %2171 = vmatpush1.bf16.msra.mxu0 %v1539
    %2172 = vmatprep.subr.bf16.mxu0 %v1544
    %2173 = vmatpush1.bf16.msra.mxu0 %v1543
    %2174 = vmatprep.subr.bf16.mxu0 %v1548
    %2175 = vmatpush1.bf16.msra.mxu0 %v1547
    %2176 = vmatprep.subr.bf16.mxu0 %v1552
    %2177 = vmatpush1.bf16.msra.mxu0 %v1551
    %2178 = vmatprep.subr.bf16.mxu0 %v1556
    %2179 = vmatpush1.bf16.msra.mxu0 %v1555
    %2180 = vmatprep.subr.bf16.mxu0 %v1560
    %2181 = vmatpush1.bf16.msra.mxu0 %v1559
    %2182 = vmatprep.mubr.bf16.mxu0 %v382
    %2183 = vmatmul.mubr.bf16.gmra.mrb[0].mxu0 %v381
    %v2184 = vpop.f32.mrb[0].mxu0
    %v2185 = vadd.f32 %v2144, %v2184
    %v2186 = vpop.f32.mrb[0].mxu0
    %v2187 = vadd.f32 %v2146, %v2186
    %v2188 = vpop.f32.mrb[0].mxu0
    %v2189 = vpop.f32.mrb[0].mxu0
    %2190 = vdwg.mxu0
    %2191 = vmatprep.subr.bf16.mxu0 %v1564
    %2192 = vmatpush1.bf16.msra.mxu0 %v1563
    %2193 = vmatprep.subr.bf16.mxu0 %v1568
    %2194 = vmatpush1.bf16.msra.mxu0 %v1567
    %2195 = vmatprep.subr.bf16.mxu0 %v1572
    %2196 = vmatpush1.bf16.msra.mxu0 %v1571
    %2197 = vmatprep.subr.bf16.mxu0 %v1576
    %2198 = vmatpush1.bf16.msra.mxu0 %v1575
    %2199 = vmatprep.subr.bf16.mxu0 %v1580
    %2200 = vmatpush1.bf16.msra.mxu0 %v1579
    %2201 = vmatprep.subr.bf16.mxu0 %v1584
    %2202 = vmatpush1.bf16.msra.mxu0 %v1583
    %2203 = vmatprep.subr.bf16.mxu0 %v1588
    %2204 = vmatpush1.bf16.msra.mxu0 %v1587
    %2205 = vmatprep.subr.bf16.mxu0 %v1592
    %2206 = vmatpush1.bf16.msra.mxu0 %v1591
    %2207 = vmatprep.subr.bf16.mxu0 %v1596
    %2208 = vmatpush1.bf16.msra.mxu0 %v1595
    %2209 = vmatprep.subr.bf16.mxu0 %v1600
    %2210 = vmatpush1.bf16.msra.mxu0 %v1599
    %2211 = vmatprep.subr.bf16.mxu0 %v1604
    %2212 = vmatpush1.bf16.msra.mxu0 %v1603
    %2213 = vmatprep.subr.bf16.mxu0 %v1608
    %2214 = vmatpush1.bf16.msra.mxu0 %v1607
    %2215 = vmatprep.subr.bf16.mxu0 %v1612
    %2216 = vmatpush1.bf16.msra.mxu0 %v1611
    %2217 = vmatprep.subr.bf16.mxu0 %v1616
    %2218 = vmatpush1.bf16.msra.mxu0 %v1615
    %2219 = vmatprep.subr.bf16.mxu0 %v1620
    %2220 = vmatpush1.bf16.msra.mxu0 %v1619
    %2221 = vmatprep.subr.bf16.mxu0 %v1624
    %2222 = vmatpush1.bf16.msra.mxu0 %v1623
    %2223 = vmatprep.mubr.bf16.mxu0 %v384
    %2224 = vmatmul.mubr.bf16.gmra.mrb[0].mxu0 %v383
    %v2225 = vpop.f32.mrb[0].mxu0
    %v2226 = vadd.f32 %v2185, %v2225
    %v2227 = vpop.f32.mrb[0].mxu0
    %v2228 = vadd.f32 %v2187, %v2227
    %v2229 = vpop.f32.mrb[0].mxu0
    %v2230 = vpop.f32.mrb[0].mxu0
    %2231 = vdwg.mxu0
    %2232 = vmatprep.subr.bf16.mxu0 %v1628
    %2233 = vmatpush1.bf16.msra.mxu0 %v1627
    %2234 = vmatprep.subr.bf16.mxu0 %v1632
    %2235 = vmatpush1.bf16.msra.mxu0 %v1631
    %2236 = vmatprep.subr.bf16.mxu0 %v1636
    %2237 = vmatpush1.bf16.msra.mxu0 %v1635
    %2238 = vmatprep.subr.bf16.mxu0 %v1640
    %2239 = vmatpush1.bf16.msra.mxu0 %v1639
    %2240 = vmatprep.subr.bf16.mxu0 %v1644
    %2241 = vmatpush1.bf16.msra.mxu0 %v1643
    %2242 = vmatprep.subr.bf16.mxu0 %v1648
    %2243 = vmatpush1.bf16.msra.mxu0 %v1647
    %2244 = vmatprep.subr.bf16.mxu0 %v1652
    %2245 = vmatpush1.bf16.msra.mxu0 %v1651
    %2246 = vmatprep.subr.bf16.mxu0 %v1656
    %2247 = vmatpush1.bf16.msra.mxu0 %v1655
    %2248 = vmatprep.subr.bf16.mxu0 %v1660
    %2249 = vmatpush1.bf16.msra.mxu0 %v1659
    %2250 = vmatprep.subr.bf16.mxu0 %v1664
    %2251 = vmatpush1.bf16.msra.mxu0 %v1663
    %2252 = vmatprep.subr.bf16.mxu0 %v1668
    %2253 = vmatpush1.bf16.msra.mxu0 %v1667
    %2254 = vmatprep.subr.bf16.mxu0 %v1672
    %2255 = vmatpush1.bf16.msra.mxu0 %v1671
    %2256 = vmatprep.subr.bf16.mxu0 %v1676
    %2257 = vmatpush1.bf16.msra.mxu0 %v1675
    %2258 = vmatprep.subr.bf16.mxu0 %v1680
    %2259 = vmatpush1.bf16.msra.mxu0 %v1679
    %2260 = vmatprep.subr.bf16.mxu0 %v1684
    %2261 = vmatpush1.bf16.msra.mxu0 %v1683
    %2262 = vmatprep.subr.bf16.mxu0 %v1688
    %2263 = vmatpush1.bf16.msra.mxu0 %v1687
    %2264 = vmatprep.mubr.bf16.mxu0 %v386
    %2265 = vmatmul.mubr.bf16.gmra.mrb[0].mxu0 %v385
    %v2266 = vpop.f32.mrb[0].mxu0
    %v2267 = vadd.f32 %v2226, %v2266
    %v2268 = vpop.f32.mrb[0].mxu0
    %v2269 = vadd.f32 %v2228, %v2268
    %v2270 = vpop.f32.mrb[0].mxu0
    %v2271 = vpop.f32.mrb[0].mxu0
    %2272 = vdwg.mxu0
    %v2273 = vmax.f32 %v2103, 0.0
    %v2274 = vmax.f32 %v2105, 0.0
    %v2275 = vmax.f32 %v2267, 0.0
    %v2276 = vmax.f32 %v2269, 0.0
    %v2277 = vpack.c.bf16 %v2273, %v2273
    %v2278 = vpack.c.bf16 %v2274, %v2274
    %v2279 = vpack.c.bf16 %v2275, %v2275
    %v2280 = vpack.c.bf16 %v2276, %v2276
    %v2281 = vld [vmem:[#allocation7] sm:$0xff]
    %v2282 = vld [vmem:[#allocation7 + $0x8] sm:$0xff]
    %v2283 = vld [vmem:[#allocation7 + $0x10] sm:$0xff]
    %v2284 = vld [vmem:[#allocation7 + $0x18] sm:$0xff]
    %v2285 = vld [vmem:[#allocation7 + $0x20] sm:$0xff]
    %v2286 = vld [vmem:[#allocation7 + $0x28] sm:$0xff]
    %v2287 = vld [vmem:[#allocation7 + $0x30] sm:$0xff]
    %v2288 = vld [vmem:[#allocation7 + $0x38] sm:$0xff]
    %v2289 = vld [vmem:[#allocation7 + $0x40] sm:$0xff]
    %v2290 = vld [vmem:[#allocation7 + $0x48] sm:$0xff]
    %v2291 = vld [vmem:[#allocation7 + $0x50] sm:$0xff]
    %v2292 = vld [vmem:[#allocation7 + $0x58] sm:$0xff]
    %v2293 = vld [vmem:[#allocation7 + $0x60] sm:$0xff]
    %v2294 = vld [vmem:[#allocation7 + $0x68] sm:$0xff]
    %v2295 = vld [vmem:[#allocation7 + $0x70] sm:$0xff]
    %v2296 = vld [vmem:[#allocation7 + $0x78] sm:$0xff]
    %v2297 = vld [vmem:[#allocation7 + $0x80] sm:$0xff]
    %v2298 = vld [vmem:[#allocation7 + $0x88] sm:$0xff]
    %v2299 = vld [vmem:[#allocation7 + $0x90] sm:$0xff]
    %v2300 = vld [vmem:[#allocation7 + $0x98] sm:$0xff]
    %v2301 = vld [vmem:[#allocation7 + $0xa0] sm:$0xff]
    %v2302 = vld [vmem:[#allocation7 + $0xa8] sm:$0xff]
    %v2303 = vld [vmem:[#allocation7 + $0xb0] sm:$0xff]
    %v2304 = vld [vmem:[#allocation7 + $0xb8] sm:$0xff]
    %v2305 = vld [vmem:[#allocation7 + $0xc0] sm:$0xff]
    %v2306 = vld [vmem:[#allocation7 + $0xc8] sm:$0xff]
    %v2307 = vld [vmem:[#allocation7 + $0xd0] sm:$0xff]
    %v2308 = vld [vmem:[#allocation7 + $0xd8] sm:$0xff]
    %v2309 = vld [vmem:[#allocation7 + $0xe0] sm:$0xff]
    %v2310 = vld [vmem:[#allocation7 + $0xe8] sm:$0xff]
    %v2311 = vld [vmem:[#allocation7 + $0xf0] sm:$0xff]
    %v2312 = vld [vmem:[#allocation7 + $0xf8] sm:$0xff]
    %v2313 = vld [vmem:[#allocation7 + $0x100] sm:$0xff]
    %v2314 = vld [vmem:[#allocation7 + $0x108] sm:$0xff]
    %v2315 = vld [vmem:[#allocation7 + $0x110] sm:$0xff]
    %v2316 = vld [vmem:[#allocation7 + $0x118] sm:$0xff]
    %v2317 = vld [vmem:[#allocation7 + $0x120] sm:$0xff]
    %v2318 = vld [vmem:[#allocation7 + $0x128] sm:$0xff]
    %v2319 = vld [vmem:[#allocation7 + $0x130] sm:$0xff]
    %v2320 = vld [vmem:[#allocation7 + $0x138] sm:$0xff]
    %v2321 = vld [vmem:[#allocation7 + $0x140] sm:$0xff]
    %v2322 = vld [vmem:[#allocation7 + $0x148] sm:$0xff]
    %v2323 = vld [vmem:[#allocation7 + $0x150] sm:$0xff]
    %v2324 = vld [vmem:[#allocation7 + $0x158] sm:$0xff]
    %v2325 = vld [vmem:[#allocation7 + $0x160] sm:$0xff]
    %v2326 = vld [vmem:[#allocation7 + $0x168] sm:$0xff]
    %v2327 = vld [vmem:[#allocation7 + $0x170] sm:$0xff]
    %v2328 = vld [vmem:[#allocation7 + $0x178] sm:$0xff]
    %v2329 = vld [vmem:[#allocation7 + $0x180] sm:$0xff]
    %v2330 = vld [vmem:[#allocation7 + $0x188] sm:$0xff]
    %v2331 = vld [vmem:[#allocation7 + $0x190] sm:$0xff]
    %v2332 = vld [vmem:[#allocation7 + $0x198] sm:$0xff]
    %v2333 = vld [vmem:[#allocation7 + $0x1a0] sm:$0xff]
    %v2334 = vld [vmem:[#allocation7 + $0x1a8] sm:$0xff]
    %v2335 = vld [vmem:[#allocation7 + $0x1b0] sm:$0xff]
    %v2336 = vld [vmem:[#allocation7 + $0x1b8] sm:$0xff]
    %v2337 = vld [vmem:[#allocation7 + $0x1c0] sm:$0xff]
    %v2338 = vld [vmem:[#allocation7 + $0x1c8] sm:$0xff]
    %v2339 = vld [vmem:[#allocation7 + $0x1d0] sm:$0xff]
    %v2340 = vld [vmem:[#allocation7 + $0x1d8] sm:$0xff]
    %v2341 = vld [vmem:[#allocation7 + $0x1e0] sm:$0xff]
    %v2342 = vld [vmem:[#allocation7 + $0x1e8] sm:$0xff]
    %v2343 = vld [vmem:[#allocation7 + $0x1f0] sm:$0xff]
    %v2344 = vld [vmem:[#allocation7 + $0x1f8] sm:$0xff]
    %v2345 = vld [vmem:[#allocation10 + $0xc] sm:$0x3]
    %v2347 = vlaneseq
    %v2348 = vshrl.u32 %v2347, 7
    %v2349 = vsub.s32 0, %v2348
    %v2350 = vrot.slane %v2345, %v2349
    %v2351 = vlaneseq
    %v2352 = vshrl.u32 %v2351, 7
    %v2353 = vsub.s32 1, %v2352
    %v2354 = vrot.slane %v2345, %v2353
    %v2421 = vunpack.c.l.b16 %v2281
    %v2422 = vunpack.c.h.b16 %v2281
    %v2423 = vunpack.c.l.b16 %v2282
    %v2424 = vunpack.c.h.b16 %v2282
    %v2425 = vunpack.c.l.b16 %v2283
    %v2426 = vunpack.c.h.b16 %v2283
    %v2427 = vunpack.c.l.b16 %v2284
    %v2428 = vunpack.c.h.b16 %v2284
    %v2429 = vunpack.c.l.b16 %v2285
    %v2430 = vunpack.c.h.b16 %v2285
    %v2431 = vunpack.c.l.b16 %v2286
    %v2432 = vunpack.c.h.b16 %v2286
    %v2433 = vunpack.c.l.b16 %v2287
    %v2434 = vunpack.c.h.b16 %v2287
    %v2435 = vunpack.c.l.b16 %v2288
    %v2436 = vunpack.c.h.b16 %v2288
    %v2437 = vunpack.c.l.b16 %v2289
    %v2438 = vunpack.c.h.b16 %v2289
    %v2439 = vunpack.c.l.b16 %v2290
    %v2440 = vunpack.c.h.b16 %v2290
    %v2441 = vunpack.c.l.b16 %v2291
    %v2442 = vunpack.c.h.b16 %v2291
    %v2443 = vunpack.c.l.b16 %v2292
    %v2444 = vunpack.c.h.b16 %v2292
    %v2445 = vunpack.c.l.b16 %v2293
    %v2446 = vunpack.c.h.b16 %v2293
    %v2447 = vunpack.c.l.b16 %v2294
    %v2448 = vunpack.c.h.b16 %v2294
    %v2449 = vunpack.c.l.b16 %v2295
    %v2450 = vunpack.c.h.b16 %v2295
    %v2451 = vunpack.c.l.b16 %v2296
    %v2452 = vunpack.c.h.b16 %v2296
    %v2453 = vunpack.c.l.b16 %v2297
    %v2454 = vunpack.c.h.b16 %v2297
    %v2455 = vunpack.c.l.b16 %v2298
    %v2456 = vunpack.c.h.b16 %v2298
    %v2457 = vunpack.c.l.b16 %v2299
    %v2458 = vunpack.c.h.b16 %v2299
    %v2459 = vunpack.c.l.b16 %v2300
    %v2460 = vunpack.c.h.b16 %v2300
    %v2461 = vunpack.c.l.b16 %v2301
    %v2462 = vunpack.c.h.b16 %v2301
    %v2463 = vunpack.c.l.b16 %v2302
    %v2464 = vunpack.c.h.b16 %v2302
    %v2465 = vunpack.c.l.b16 %v2303
    %v2466 = vunpack.c.h.b16 %v2303
    %v2467 = vunpack.c.l.b16 %v2304
    %v2468 = vunpack.c.h.b16 %v2304
    %v2469 = vunpack.c.l.b16 %v2305
    %v2470 = vunpack.c.h.b16 %v2305
    %v2471 = vunpack.c.l.b16 %v2306
    %v2472 = vunpack.c.h.b16 %v2306
    %v2473 = vunpack.c.l.b16 %v2307
    %v2474 = vunpack.c.h.b16 %v2307
    %v2475 = vunpack.c.l.b16 %v2308
    %v2476 = vunpack.c.h.b16 %v2308
    %v2477 = vunpack.c.l.b16 %v2309
    %v2478 = vunpack.c.h.b16 %v2309
    %v2479 = vunpack.c.l.b16 %v2310
    %v2480 = vunpack.c.h.b16 %v2310
    %v2481 = vunpack.c.l.b16 %v2311
    %v2482 = vunpack.c.h.b16 %v2311
    %v2483 = vunpack.c.l.b16 %v2312
    %v2484 = vunpack.c.h.b16 %v2312
    %v2485 = vunpack.c.l.b16 %v2313
    %v2486 = vunpack.c.h.b16 %v2313
    %v2487 = vunpack.c.l.b16 %v2314
    %v2488 = vunpack.c.h.b16 %v2314
    %v2489 = vunpack.c.l.b16 %v2315
    %v2490 = vunpack.c.h.b16 %v2315
    %v2491 = vunpack.c.l.b16 %v2316
    %v2492 = vunpack.c.h.b16 %v2316
    %v2493 = vunpack.c.l.b16 %v2317
    %v2494 = vunpack.c.h.b16 %v2317
    %v2495 = vunpack.c.l.b16 %v2318
    %v2496 = vunpack.c.h.b16 %v2318
    %v2497 = vunpack.c.l.b16 %v2319
    %v2498 = vunpack.c.h.b16 %v2319
    %v2499 = vunpack.c.l.b16 %v2320
    %v2500 = vunpack.c.h.b16 %v2320
    %v2501 = vunpack.c.l.b16 %v2321
    %v2502 = vunpack.c.h.b16 %v2321
    %v2503 = vunpack.c.l.b16 %v2322
    %v2504 = vunpack.c.h.b16 %v2322
    %v2505 = vunpack.c.l.b16 %v2323
    %v2506 = vunpack.c.h.b16 %v2323
    %v2507 = vunpack.c.l.b16 %v2324
    %v2508 = vunpack.c.h.b16 %v2324
    %v2509 = vunpack.c.l.b16 %v2325
    %v2510 = vunpack.c.h.b16 %v2325
    %v2511 = vunpack.c.l.b16 %v2326
    %v2512 = vunpack.c.h.b16 %v2326
    %v2513 = vunpack.c.l.b16 %v2327
    %v2514 = vunpack.c.h.b16 %v2327
    %v2515 = vunpack.c.l.b16 %v2328
    %v2516 = vunpack.c.h.b16 %v2328
    %v2517 = vunpack.c.l.b16 %v2329
    %v2518 = vunpack.c.h.b16 %v2329
    %v2519 = vunpack.c.l.b16 %v2330
    %v2520 = vunpack.c.h.b16 %v2330
    %v2521 = vunpack.c.l.b16 %v2331
    %v2522 = vunpack.c.h.b16 %v2331
    %v2523 = vunpack.c.l.b16 %v2332
    %v2524 = vunpack.c.h.b16 %v2332
    %v2525 = vunpack.c.l.b16 %v2333
    %v2526 = vunpack.c.h.b16 %v2333
    %v2527 = vunpack.c.l.b16 %v2334
    %v2528 = vunpack.c.h.b16 %v2334
    %v2529 = vunpack.c.l.b16 %v2335
    %v2530 = vunpack.c.h.b16 %v2335
    %v2531 = vunpack.c.l.b16 %v2336
    %v2532 = vunpack.c.h.b16 %v2336
    %v2533 = vunpack.c.l.b16 %v2337
    %v2534 = vunpack.c.h.b16 %v2337
    %v2535 = vunpack.c.l.b16 %v2338
    %v2536 = vunpack.c.h.b16 %v2338
    %v2537 = vunpack.c.l.b16 %v2339
    %v2538 = vunpack.c.h.b16 %v2339
    %v2539 = vunpack.c.l.b16 %v2340
    %v2540 = vunpack.c.h.b16 %v2340
    %v2541 = vunpack.c.l.b16 %v2341
    %v2542 = vunpack.c.h.b16 %v2341
    %v2543 = vunpack.c.l.b16 %v2342
    %v2544 = vunpack.c.h.b16 %v2342
    %v2545 = vunpack.c.l.b16 %v2343
    %v2546 = vunpack.c.h.b16 %v2343
    %v2547 = vunpack.c.l.b16 %v2344
    %v2548 = vunpack.c.h.b16 %v2344
    %v2549 = vpack.c.b16 %v2423, %v2421
    %v2550 = vpack.c.b16 %v2424, %v2422
    %v2551 = vpack.c.b16 %v2427, %v2425
    %v2552 = vpack.c.b16 %v2428, %v2426
    %v2553 = vpack.c.b16 %v2431, %v2429
    %v2554 = vpack.c.b16 %v2432, %v2430
    %v2555 = vpack.c.b16 %v2435, %v2433
    %v2556 = vpack.c.b16 %v2436, %v2434
    %v2557 = vpack.c.b16 %v2439, %v2437
    %v2558 = vpack.c.b16 %v2440, %v2438
    %v2559 = vpack.c.b16 %v2443, %v2441
    %v2560 = vpack.c.b16 %v2444, %v2442
    %v2561 = vpack.c.b16 %v2447, %v2445
    %v2562 = vpack.c.b16 %v2448, %v2446
    %v2563 = vpack.c.b16 %v2451, %v2449
    %v2564 = vpack.c.b16 %v2452, %v2450
    %v2565 = vpack.c.b16 %v2455, %v2453
    %v2566 = vpack.c.b16 %v2456, %v2454
    %v2567 = vpack.c.b16 %v2459, %v2457
    %v2568 = vpack.c.b16 %v2460, %v2458
    %v2569 = vpack.c.b16 %v2463, %v2461
    %v2570 = vpack.c.b16 %v2464, %v2462
    %v2571 = vpack.c.b16 %v2467, %v2465
    %v2572 = vpack.c.b16 %v2468, %v2466
    %v2573 = vpack.c.b16 %v2471, %v2469
    %v2574 = vpack.c.b16 %v2472, %v2470
    %v2575 = vpack.c.b16 %v2475, %v2473
    %v2576 = vpack.c.b16 %v2476, %v2474
    %v2577 = vpack.c.b16 %v2479, %v2477
    %v2578 = vpack.c.b16 %v2480, %v2478
    %v2579 = vpack.c.b16 %v2483, %v2481
    %v2580 = vpack.c.b16 %v2484, %v2482
    %v2581 = vpack.c.b16 %v2487, %v2485
    %v2582 = vpack.c.b16 %v2488, %v2486
    %v2583 = vpack.c.b16 %v2491, %v2489
    %v2584 = vpack.c.b16 %v2492, %v2490
    %v2585 = vpack.c.b16 %v2495, %v2493
    %v2586 = vpack.c.b16 %v2496, %v2494
    %v2587 = vpack.c.b16 %v2499, %v2497
    %v2588 = vpack.c.b16 %v2500, %v2498
    %v2589 = vpack.c.b16 %v2503, %v2501
    %v2590 = vpack.c.b16 %v2504, %v2502
    %v2591 = vpack.c.b16 %v2507, %v2505
    %v2592 = vpack.c.b16 %v2508, %v2506
    %v2593 = vpack.c.b16 %v2511, %v2509
    %v2594 = vpack.c.b16 %v2512, %v2510
    %v2595 = vpack.c.b16 %v2515, %v2513
    %v2596 = vpack.c.b16 %v2516, %v2514
    %v2597 = vpack.c.b16 %v2519, %v2517
    %v2598 = vpack.c.b16 %v2520, %v2518
    %v2599 = vpack.c.b16 %v2523, %v2521
    %v2600 = vpack.c.b16 %v2524, %v2522
    %v2601 = vpack.c.b16 %v2527, %v2525
    %v2602 = vpack.c.b16 %v2528, %v2526
    %v2603 = vpack.c.b16 %v2531, %v2529
    %v2604 = vpack.c.b16 %v2532, %v2530
    %v2605 = vpack.c.b16 %v2535, %v2533
    %v2606 = vpack.c.b16 %v2536, %v2534
    %v2607 = vpack.c.b16 %v2539, %v2537
    %v2608 = vpack.c.b16 %v2540, %v2538
    %v2609 = vpack.c.b16 %v2543, %v2541
    %v2610 = vpack.c.b16 %v2544, %v2542
    %v2611 = vpack.c.b16 %v2547, %v2545
    %v2612 = vpack.c.b16 %v2548, %v2546
    %2677 = vmatprep.subr.bf16.mxu0 %v2550
    %2678 = vmatpush1.bf16.msra.mxu0 %v2549
    %2679 = vmatprep.subr.bf16.mxu0 %v2552
    %2680 = vmatpush1.bf16.msra.mxu0 %v2551
    %2681 = vmatprep.subr.bf16.mxu0 %v2554
    %2682 = vmatpush1.bf16.msra.mxu0 %v2553
    %2683 = vmatprep.subr.bf16.mxu0 %v2556
    %2684 = vmatpush1.bf16.msra.mxu0 %v2555
    %2685 = vmatprep.subr.bf16.mxu0 %v2558
    %2686 = vmatpush1.bf16.msra.mxu0 %v2557
    %2687 = vmatprep.subr.bf16.mxu0 %v2560
    %2688 = vmatpush1.bf16.msra.mxu0 %v2559
    %2689 = vmatprep.subr.bf16.mxu0 %v2562
    %2690 = vmatpush1.bf16.msra.mxu0 %v2561
    %2691 = vmatprep.subr.bf16.mxu0 %v2564
    %2692 = vmatpush1.bf16.msra.mxu0 %v2563
    %2693 = vmatprep.subr.bf16.mxu0 %v2566
    %2694 = vmatpush1.bf16.msra.mxu0 %v2565
    %2695 = vmatprep.subr.bf16.mxu0 %v2568
    %2696 = vmatpush1.bf16.msra.mxu0 %v2567
    %2697 = vmatprep.subr.bf16.mxu0 %v2570
    %2698 = vmatpush1.bf16.msra.mxu0 %v2569
    %2699 = vmatprep.subr.bf16.mxu0 %v2572
    %2700 = vmatpush1.bf16.msra.mxu0 %v2571
    %2701 = vmatprep.subr.bf16.mxu0 %v2574
    %2702 = vmatpush1.bf16.msra.mxu0 %v2573
    %2703 = vmatprep.subr.bf16.mxu0 %v2576
    %2704 = vmatpush1.bf16.msra.mxu0 %v2575
    %2705 = vmatprep.subr.bf16.mxu0 %v2578
    %2706 = vmatpush1.bf16.msra.mxu0 %v2577
    %2707 = vmatprep.subr.bf16.mxu0 %v2580
    %2708 = vmatpush1.bf16.msra.mxu0 %v2579
    %2709 = vmatprep.mubr.bf16.mxu0 %v2278
    %2710 = vmatmul.mubr.bf16.gmra.mrb[0].mxu0 %v2277
    %v2711 = vpop.f32.mrb[0].mxu0
    %v2712 = vadd.f32 %v2350, %v2711
    %v2713 = vpop.f32.mrb[0].mxu0
    %v2714 = vadd.f32 %v2354, %v2713
    %v2715 = vpop.f32.mrb[0].mxu0
    %v2716 = vpop.f32.mrb[0].mxu0
    %2717 = vdwg.mxu0
    %2718 = vmatprep.subr.bf16.mxu0 %v2582
    %2719 = vmatpush1.bf16.msra.mxu0 %v2581
    %2720 = vmatprep.subr.bf16.mxu0 %v2584
    %2721 = vmatpush1.bf16.msra.mxu0 %v2583
    %2722 = vmatprep.subr.bf16.mxu0 %v2586
    %2723 = vmatpush1.bf16.msra.mxu0 %v2585
    %2724 = vmatprep.subr.bf16.mxu0 %v2588
    %2725 = vmatpush1.bf16.msra.mxu0 %v2587
    %2726 = vmatprep.subr.bf16.mxu0 %v2590
    %2727 = vmatpush1.bf16.msra.mxu0 %v2589
    %2728 = vmatprep.subr.bf16.mxu0 %v2592
    %2729 = vmatpush1.bf16.msra.mxu0 %v2591
    %2730 = vmatprep.subr.bf16.mxu0 %v2594
    %2731 = vmatpush1.bf16.msra.mxu0 %v2593
    %2732 = vmatprep.subr.bf16.mxu0 %v2596
    %2733 = vmatpush1.bf16.msra.mxu0 %v2595
    %2734 = vmatprep.subr.bf16.mxu0 %v2598
    %2735 = vmatpush1.bf16.msra.mxu0 %v2597
    %2736 = vmatprep.subr.bf16.mxu0 %v2600
    %2737 = vmatpush1.bf16.msra.mxu0 %v2599
    %2738 = vmatprep.subr.bf16.mxu0 %v2602
    %2739 = vmatpush1.bf16.msra.mxu0 %v2601
    %2740 = vmatprep.subr.bf16.mxu0 %v2604
    %2741 = vmatpush1.bf16.msra.mxu0 %v2603
    %2742 = vmatprep.subr.bf16.mxu0 %v2606
    %2743 = vmatpush1.bf16.msra.mxu0 %v2605
    %2744 = vmatprep.subr.bf16.mxu0 %v2608
    %2745 = vmatpush1.bf16.msra.mxu0 %v2607
    %2746 = vmatprep.subr.bf16.mxu0 %v2610
    %2747 = vmatpush1.bf16.msra.mxu0 %v2609
    %2748 = vmatprep.subr.bf16.mxu0 %v2612
    %2749 = vmatpush1.bf16.msra.mxu0 %v2611
    %2750 = vmatprep.mubr.bf16.mxu0 %v2280
    %2751 = vmatmul.mubr.bf16.gmra.mrb[0].mxu0 %v2279
    %v2752 = vpop.f32.mrb[0].mxu0
    %v2753 = vadd.f32 %v2712, %v2752
    %v2754 = vpop.f32.mrb[0].mxu0
    %v2755 = vadd.f32 %v2714, %v2754
    %v2756 = vpop.f32.mrb[0].mxu0
    %v2757 = vpop.f32.mrb[0].mxu0
    %2758 = vdwg.mxu0
    %v2759 = vmax.f32 %v2753, 0.0
    %v2760 = vmax.f32 %v2755, 0.0
    %v2761 = vld [vmem:[%s4] sm:$0xf]
    %v2762 = vld [vmem:[%s4 + $0x4] sm:$0xf]
    %v2763 = vld [vmem:[%s4 + $0x8] sm:$0xf]
    %v2764 = vld [vmem:[%s4 + $0xc] sm:$0xf]
    %v2765 = vld [vmem:[%s4 + $0x10] sm:$0xf]
    %v2766 = vld [vmem:[%s4 + $0x14] sm:$0xf]
    %v2767 = vld [vmem:[%s4 + $0x18] sm:$0xf]
    %v2768 = vld [vmem:[%s4 + $0x1c] sm:$0xf]
    %v2769 = vld [vmem:[%s4 + $0x20] sm:$0xf]
    %v2770 = vld [vmem:[%s4 + $0x24] sm:$0xf]
    %v2771 = vld [vmem:[%s4 + $0x28] sm:$0xf]
    %v2772 = vld [vmem:[%s4 + $0x2c] sm:$0xf]
    %v2773 = vld [vmem:[%s4 + $0x30] sm:$0xf]
    %v2774 = vld [vmem:[%s4 + $0x34] sm:$0xf]
    %v2775 = vld [vmem:[%s4 + $0x38] sm:$0xf]
    %v2776 = vld [vmem:[%s4 + $0x3c] sm:$0xf]
    %v2777 = vld [vmem:[%s4 + $0x40] sm:$0xf]
    %v2778 = vld [vmem:[%s4 + $0x44] sm:$0xf]
    %v2779 = vld [vmem:[%s4 + $0x48] sm:$0xf]
    %v2780 = vld [vmem:[%s4 + $0x4c] sm:$0xf]
    %v2781 = vld [vmem:[%s4 + $0x50] sm:$0xf]
    %v2782 = vld [vmem:[%s4 + $0x54] sm:$0xf]
    %v2783 = vld [vmem:[%s4 + $0x58] sm:$0xf]
    %v2784 = vld [vmem:[%s4 + $0x5c] sm:$0xf]
    %v2785 = vld [vmem:[%s4 + $0x60] sm:$0xf]
    %v2786 = vld [vmem:[%s4 + $0x64] sm:$0xf]
    %v2787 = vld [vmem:[%s4 + $0x68] sm:$0xf]
    %v2788 = vld [vmem:[%s4 + $0x6c] sm:$0xf]
    %v2789 = vld [vmem:[%s4 + $0x70] sm:$0xf]
    %v2790 = vld [vmem:[%s4 + $0x74] sm:$0xf]
    %v2791 = vld [vmem:[%s4 + $0x78] sm:$0xf]
    %v2792 = vld [vmem:[%s4 + $0x7c] sm:$0xf]
    %v2793 = vunpack.c.l.bf16 %v2761
    %v2794 = vunpack.c.l.bf16 %v2762
    %v2795 = vunpack.c.l.bf16 %v2763
    %v2796 = vunpack.c.l.bf16 %v2764
    %v2797 = vunpack.c.l.bf16 %v2765
    %v2798 = vunpack.c.l.bf16 %v2766
    %v2799 = vunpack.c.l.bf16 %v2767
    %v2800 = vunpack.c.l.bf16 %v2768
    %v2801 = vunpack.c.l.bf16 %v2769
    %v2802 = vunpack.c.l.bf16 %v2770
    %v2803 = vunpack.c.l.bf16 %v2771
    %v2804 = vunpack.c.l.bf16 %v2772
    %v2805 = vunpack.c.l.bf16 %v2773
    %v2806 = vunpack.c.l.bf16 %v2774
    %v2807 = vunpack.c.l.bf16 %v2775
    %v2808 = vunpack.c.l.bf16 %v2776
    %v2809 = vunpack.c.l.bf16 %v2777
    %v2810 = vunpack.c.l.bf16 %v2778
    %v2811 = vunpack.c.l.bf16 %v2779
    %v2812 = vunpack.c.l.bf16 %v2780
    %v2813 = vunpack.c.l.bf16 %v2781
    %v2814 = vunpack.c.l.bf16 %v2782
    %v2815 = vunpack.c.l.bf16 %v2783
    %v2816 = vunpack.c.l.bf16 %v2784
    %v2817 = vunpack.c.l.bf16 %v2785
    %v2818 = vunpack.c.l.bf16 %v2786
    %v2819 = vunpack.c.l.bf16 %v2787
    %v2820 = vunpack.c.l.bf16 %v2788
    %v2821 = vunpack.c.l.bf16 %v2789
    %v2822 = vunpack.c.l.bf16 %v2790
    %v2823 = vunpack.c.l.bf16 %v2791
    %v2824 = vunpack.c.l.bf16 %v2792
    %v2825 = vld [vmem:[#allocation10 + $0xe] sm:$0x1]
    %v2827 = vlaneseq
    %v2828 = vshrl.u32 %v2827, 7
    %v2829 = vsub.s32 0, %v2828
    %v2830 = vrot.slane %v2825, %v2829
    %2832 = vmatprep.subr.mxu0 0.0
    %2833 = vmatpush1.msra.mxu0 %v2793
    %2834 = vmatprep.subr.mxu0 0.0
    %2835 = vmatpush1.msra.mxu0 %v2794
    %2836 = vmatprep.subr.mxu0 0.0
    %2837 = vmatpush1.msra.mxu0 %v2795
    %2838 = vmatprep.subr.mxu0 0.0
    %2839 = vmatpush1.msra.mxu0 %v2796
    %2840 = vmatprep.subr.mxu0 0.0
    %2841 = vmatpush1.msra.mxu0 %v2797
    %2842 = vmatprep.subr.mxu0 0.0
    %2843 = vmatpush1.msra.mxu0 %v2798
    %2844 = vmatprep.subr.mxu0 0.0
    %2845 = vmatpush1.msra.mxu0 %v2799
    %2846 = vmatprep.subr.mxu0 0.0
    %2847 = vmatpush1.msra.mxu0 %v2800
    %2848 = vmatprep.subr.mxu0 0.0
    %2849 = vmatpush1.msra.mxu0 %v2801
    %2850 = vmatprep.subr.mxu0 0.0
    %2851 = vmatpush1.msra.mxu0 %v2802
    %2852 = vmatprep.subr.mxu0 0.0
    %2853 = vmatpush1.msra.mxu0 %v2803
    %2854 = vmatprep.subr.mxu0 0.0
    %2855 = vmatpush1.msra.mxu0 %v2804
    %2856 = vmatprep.subr.mxu0 0.0
    %2857 = vmatpush1.msra.mxu0 %v2805
    %2858 = vmatprep.subr.mxu0 0.0
    %2859 = vmatpush1.msra.mxu0 %v2806
    %2860 = vmatprep.subr.mxu0 0.0
    %2861 = vmatpush1.msra.mxu0 %v2807
    %2862 = vmatprep.subr.mxu0 0.0
    %2863 = vmatpush1.msra.mxu0 %v2808
    %2864 = vmatprep.subr.mxu0 0.0
    %2865 = vmatpush1.msra.mxu0 %v2809
    %2866 = vmatprep.subr.mxu0 0.0
    %2867 = vmatpush1.msra.mxu0 %v2810
    %2868 = vmatprep.subr.mxu0 0.0
    %2869 = vmatpush1.msra.mxu0 %v2811
    %2870 = vmatprep.subr.mxu0 0.0
    %2871 = vmatpush1.msra.mxu0 %v2812
    %2872 = vmatprep.subr.mxu0 0.0
    %2873 = vmatpush1.msra.mxu0 %v2813
    %2874 = vmatprep.subr.mxu0 0.0
    %2875 = vmatpush1.msra.mxu0 %v2814
    %2876 = vmatprep.subr.mxu0 0.0
    %2877 = vmatpush1.msra.mxu0 %v2815
    %2878 = vmatprep.subr.mxu0 0.0
    %2879 = vmatpush1.msra.mxu0 %v2816
    %2880 = vmatprep.subr.mxu0 0.0
    %2881 = vmatpush1.msra.mxu0 %v2817
    %2882 = vmatprep.subr.mxu0 0.0
    %2883 = vmatpush1.msra.mxu0 %v2818
    %2884 = vmatprep.subr.mxu0 0.0
    %2885 = vmatpush1.msra.mxu0 %v2819
    %2886 = vmatprep.subr.mxu0 0.0
    %2887 = vmatpush1.msra.mxu0 %v2820
    %2888 = vmatprep.subr.mxu0 0.0
    %2889 = vmatpush1.msra.mxu0 %v2821
    %2890 = vmatprep.subr.mxu0 0.0
    %2891 = vmatpush1.msra.mxu0 %v2822
    %2892 = vmatprep.subr.mxu0 0.0
    %2893 = vmatpush1.msra.mxu0 %v2823
    %2894 = vmatprep.subr.mxu0 0.0
    %2895 = vmatpush1.msra.mxu0 %v2824
    %2896 = vmatprep.mubr.f32.mxu0 %v2760
    %2897 = vmatmul.mubr.f32.gmra.mrb[0].mxu0 %v2759
    %v2898 = vpop.f32.mrb[0].mxu0
    %v2899 = vadd.f32 %v2830, %v2898
    %v2900 = vpop.f32.mrb[0].mxu0
    %2901 = vdwg.mxu0
    %v2902 = vmax.f32 %v2899, 0.0
    %v2903 = vld [vmem:[%s5] sm:$0xf]
    %v2904 = vld [vmem:[%s5 + $0x4] sm:$0xf]
    %v2905 = vld [vmem:[%s5 + $0x8] sm:$0xf]
    %v2906 = vld [vmem:[%s5 + $0xc] sm:$0xf]
    %v2907 = vld [vmem:[%s5 + $0x10] sm:$0xf]
    %v2908 = vld [vmem:[%s5 + $0x14] sm:$0xf]
    %v2909 = vld [vmem:[%s5 + $0x18] sm:$0xf]
    %v2910 = vld [vmem:[%s5 + $0x1c] sm:$0xf]
    %v2911 = vld [vmem:[%s5 + $0x20] sm:$0xf]
    %v2912 = vld [vmem:[%s5 + $0x24] sm:$0xf]
    %v2913 = vld [vmem:[%s5 + $0x28] sm:$0xf]
    %v2914 = vld [vmem:[%s5 + $0x2c] sm:$0xf]
    %v2915 = vld [vmem:[%s5 + $0x30] sm:$0xf]
    %v2916 = vld [vmem:[%s5 + $0x34] sm:$0xf]
    %v2917 = vld [vmem:[%s5 + $0x38] sm:$0xf]
    %v2918 = vld [vmem:[%s5 + $0x3c] sm:$0xf]
    %v2919 = vunpack.c.l.bf16 %v2903
    %v2920 = vunpack.c.l.bf16 %v2904
    %v2921 = vunpack.c.l.bf16 %v2905
    %v2922 = vunpack.c.l.bf16 %v2906
    %v2923 = vunpack.c.l.bf16 %v2907
    %v2924 = vunpack.c.l.bf16 %v2908
    %v2925 = vunpack.c.l.bf16 %v2909
    %v2926 = vunpack.c.l.bf16 %v2910
    %v2927 = vunpack.c.l.bf16 %v2911
    %v2928 = vunpack.c.l.bf16 %v2912
    %v2929 = vunpack.c.l.bf16 %v2913
    %v2930 = vunpack.c.l.bf16 %v2914
    %v2931 = vunpack.c.l.bf16 %v2915
    %v2932 = vunpack.c.l.bf16 %v2916
    %v2933 = vunpack.c.l.bf16 %v2917
    %v2934 = vunpack.c.l.bf16 %v2918
    %v2935 = vld [vmem:[#allocation10 + $0xf] sm:$0x1]
    %v2937 = vlaneseq
    %v2938 = vshrl.u32 %v2937, 7
    %v2939 = vsub.s32 0, %v2938
    %v2940 = vrot.slane %v2935, %v2939
    %2942 = vmatprep.subr.mxu0 0.0
    %2943 = vmatpush1.msra.mxu0 %v2919
    %2944 = vmatprep.subr.mxu0 0.0
    %2945 = vmatpush1.msra.mxu0 %v2920
    %2946 = vmatprep.subr.mxu0 0.0
    %2947 = vmatpush1.msra.mxu0 %v2921
    %2948 = vmatprep.subr.mxu0 0.0
    %2949 = vmatpush1.msra.mxu0 %v2922
    %2950 = vmatprep.subr.mxu0 0.0
    %2951 = vmatpush1.msra.mxu0 %v2923
    %2952 = vmatprep.subr.mxu0 0.0
    %2953 = vmatpush1.msra.mxu0 %v2924
    %2954 = vmatprep.subr.mxu0 0.0
    %2955 = vmatpush1.msra.mxu0 %v2925
    %2956 = vmatprep.subr.mxu0 0.0
    %2957 = vmatpush1.msra.mxu0 %v2926
    %2958 = vmatprep.subr.mxu0 0.0
    %2959 = vmatpush1.msra.mxu0 %v2927
    %2960 = vmatprep.subr.mxu0 0.0
    %2961 = vmatpush1.msra.mxu0 %v2928
    %2962 = vmatprep.subr.mxu0 0.0
    %2963 = vmatpush1.msra.mxu0 %v2929
    %2964 = vmatprep.subr.mxu0 0.0
    %2965 = vmatpush1.msra.mxu0 %v2930
    %2966 = vmatprep.subr.mxu0 0.0
    %2967 = vmatpush1.msra.mxu0 %v2931
    %2968 = vmatprep.subr.mxu0 0.0
    %2969 = vmatpush1.msra.mxu0 %v2932
    %2970 = vmatprep.subr.mxu0 0.0
    %2971 = vmatpush1.msra.mxu0 %v2933
    %2972 = vmatprep.subr.mxu0 0.0
    %2973 = vmatpush1.msra.mxu0 %v2934
    %2974 = vmatprep.subr.mxu0 0.0
    %2975 = vmatpush1.msra.mxu0 0.0
    %2976 = vmatprep.subr.mxu0 0.0
    %2977 = vmatpush1.msra.mxu0 0.0
    %2978 = vmatprep.subr.mxu0 0.0
    %2979 = vmatpush1.msra.mxu0 0.0
    %2980 = vmatprep.subr.mxu0 0.0
    %2981 = vmatpush1.msra.mxu0 0.0
    %2982 = vmatprep.subr.mxu0 0.0
    %2983 = vmatpush1.msra.mxu0 0.0
    %2984 = vmatprep.subr.mxu0 0.0
    %2985 = vmatpush1.msra.mxu0 0.0
    %2986 = vmatprep.subr.mxu0 0.0
    %2987 = vmatpush1.msra.mxu0 0.0
    %2988 = vmatprep.subr.mxu0 0.0
    %2989 = vmatpush1.msra.mxu0 0.0
    %2990 = vmatprep.subr.mxu0 0.0
    %2991 = vmatpush1.msra.mxu0 0.0
    %2992 = vmatprep.subr.mxu0 0.0
    %2993 = vmatpush1.msra.mxu0 0.0
    %2994 = vmatprep.subr.mxu0 0.0
    %2995 = vmatpush1.msra.mxu0 0.0
    %2996 = vmatprep.subr.mxu0 0.0
    %2997 = vmatpush1.msra.mxu0 0.0
    %2998 = vmatprep.subr.mxu0 0.0
    %2999 = vmatpush1.msra.mxu0 0.0
    %3000 = vmatprep.subr.mxu0 0.0
    %3001 = vmatpush1.msra.mxu0 0.0
    %3002 = vmatprep.subr.mxu0 0.0
    %3003 = vmatpush1.msra.mxu0 0.0
    %3004 = vmatprep.subr.mxu0 0.0
    %3005 = vmatpush1.msra.mxu0 0.0
    %3006 = vmatprep.mubr.f32.mxu0 0.0
    %3007 = vmatmul.mubr.f32.gmra.mrb[0].mxu0 %v2902
    %v3008 = vpop.f32.mrb[0].mxu0
    %v3009 = vadd.f32 %v2940, %v3008
    %v3010 = vpop.f32.mrb[0].mxu0
    %3011 = vdwg.mxu0
    %v3012 = vmax.f32 %v3009, 0.0
    %v3013 = vld [vmem:[#allocation9] sm:$0xff]
    %v3014 = vld [vmem:[#allocation9 + $0x8] sm:$0xff]
    %v3015 = vld [vmem:[#allocation9 + $0x10] sm:$0xff]
    %v3016 = vld [vmem:[#allocation9 + $0x18] sm:$0xff]
    %v3017 = vld [vmem:[#allocation9 + $0x20] sm:$0xff]
    %v3018 = vld [vmem:[#allocation9 + $0x28] sm:$0xff]
    %v3019 = vld [vmem:[#allocation9 + $0x30] sm:$0xff]
    %v3020 = vld [vmem:[#allocation9 + $0x38] sm:$0xff]
    %v3021 = vunpack.c.l.bf16 %v3013
    %v3022 = vunpack.c.h.bf16 %v3013
    %v3023 = vunpack.c.l.bf16 %v3014
    %v3024 = vunpack.c.h.bf16 %v3014
    %v3025 = vunpack.c.l.bf16 %v3015
    %v3026 = vunpack.c.h.bf16 %v3015
    %v3027 = vunpack.c.l.bf16 %v3016
    %v3028 = vunpack.c.h.bf16 %v3016
    %v3029 = vunpack.c.l.bf16 %v3017
    %v3030 = vunpack.c.h.bf16 %v3017
    %v3031 = vunpack.c.l.bf16 %v3018
    %v3032 = vunpack.c.h.bf16 %v3018
    %v3033 = vunpack.c.l.bf16 %v3019
    %v3034 = vunpack.c.h.bf16 %v3019
    %v3035 = vunpack.c.l.bf16 %v3020
    %v3036 = vunpack.c.h.bf16 %v3020
    %v3037 = vld [vmem:[#allocation10 + $0x10] sm:$0x3]
    %v3039 = vlaneseq
    %v3040 = vshrl.u32 %v3039, 7
    %v3041 = vsub.s32 0, %v3040
    %v3042 = vrot.slane %v3037, %v3041
    %v3043 = vlaneseq
    %v3044 = vshrl.u32 %v3043, 7
    %v3045 = vsub.s32 1, %v3044
    %v3046 = vrot.slane %v3037, %v3045
    %vm3049 = vcmask 523264
    %v3051 = vsel %vm3049, %v3012, 0
    %3053 = vmatprep.subr.mxu0 %v3022
    %3054 = vmatpush1.msra.mxu0 %v3021
    %3055 = vmatprep.subr.mxu0 %v3024
    %3056 = vmatpush1.msra.mxu0 %v3023
    %3057 = vmatprep.subr.mxu0 %v3026
    %3058 = vmatpush1.msra.mxu0 %v3025
    %3059 = vmatprep.subr.mxu0 %v3028
    %3060 = vmatpush1.msra.mxu0 %v3027
    %3061 = vmatprep.subr.mxu0 %v3030
    %3062 = vmatpush1.msra.mxu0 %v3029
    %3063 = vmatprep.subr.mxu0 %v3032
    %3064 = vmatpush1.msra.mxu0 %v3031
    %3065 = vmatprep.subr.mxu0 %v3034
    %3066 = vmatpush1.msra.mxu0 %v3033
    %3067 = vmatprep.subr.mxu0 %v3036
    %3068 = vmatpush1.msra.mxu0 %v3035
    %3069 = vmatprep.subr.mxu0 0.0
    %3070 = vmatpush1.msra.mxu0 0.0
    %3071 = vmatprep.subr.mxu0 0.0
    %3072 = vmatpush1.msra.mxu0 0.0
    %3073 = vmatprep.subr.mxu0 0.0
    %3074 = vmatpush1.msra.mxu0 0.0
    %3075 = vmatprep.subr.mxu0 0.0
    %3076 = vmatpush1.msra.mxu0 0.0
    %3077 = vmatprep.subr.mxu0 0.0
    %3078 = vmatpush1.msra.mxu0 0.0
    %3079 = vmatprep.subr.mxu0 0.0
    %3080 = vmatpush1.msra.mxu0 0.0
    %3081 = vmatprep.subr.mxu0 0.0
    %3082 = vmatpush1.msra.mxu0 0.0
    %3083 = vmatprep.subr.mxu0 0.0
    %3084 = vmatpush1.msra.mxu0 0.0
    %3085 = vmatprep.subr.mxu0 0.0
    %3086 = vmatpush1.msra.mxu0 0.0
    %3087 = vmatprep.subr.mxu0 0.0
    %3088 = vmatpush1.msra.mxu0 0.0
    %3089 = vmatprep.subr.mxu0 0.0
    %3090 = vmatpush1.msra.mxu0 0.0
    %3091 = vmatprep.subr.mxu0 0.0
    %3092 = vmatpush1.msra.mxu0 0.0
    %3093 = vmatprep.subr.mxu0 0.0
    %3094 = vmatpush1.msra.mxu0 0.0
    %3095 = vmatprep.subr.mxu0 0.0
    %3096 = vmatpush1.msra.mxu0 0.0
    %3097 = vmatprep.subr.mxu0 0.0
    %3098 = vmatpush1.msra.mxu0 0.0
    %3099 = vmatprep.subr.mxu0 0.0
    %3100 = vmatpush1.msra.mxu0 0.0
    %3101 = vmatprep.subr.mxu0 0.0
    %3102 = vmatpush1.msra.mxu0 0.0
    %3103 = vmatprep.subr.mxu0 0.0
    %3104 = vmatpush1.msra.mxu0 0.0
    %3105 = vmatprep.subr.mxu0 0.0
    %3106 = vmatpush1.msra.mxu0 0.0
    %3107 = vmatprep.subr.mxu0 0.0
    %3108 = vmatpush1.msra.mxu0 0.0
    %3109 = vmatprep.subr.mxu0 0.0
    %3110 = vmatpush1.msra.mxu0 0.0
    %3111 = vmatprep.subr.mxu0 0.0
    %3112 = vmatpush1.msra.mxu0 0.0
    %3113 = vmatprep.subr.mxu0 0.0
    %3114 = vmatpush1.msra.mxu0 0.0
    %3115 = vmatprep.subr.mxu0 0.0
    %3116 = vmatpush1.msra.mxu0 0.0
    %3117 = vmatprep.mubr.f32.mxu0 0.0
    %3118 = vmatmul.mubr.f32.gmra.mrb[0].mxu0 %v3051
    %v3119 = vpop.f32.mrb[0].mxu0
    %v3120 = vadd.f32 %v3042, %v3119
    %v3121 = vpop.f32.mrb[0].mxu0
    %v3122 = vadd.f32 %v3046, %v3121
    %3123 = vdwg.mxu0
    %v3124 = vtanh.pop %v3120
    %v3125 = vtanh.pop %v3122
    %v3126 = vadd.f32 %v3125, 1.0
    %v3127 = vmul.f32 %v3126, 10.0
    %v3128 = vadd.f32 %v3127, -20.0
    %v3129 = vmul.f32 %v3128, 1.442695
    %v3130 = vpow.pop %v3129
    %v3131 = vld [vmem:[%s8] sm:$0xff]
    %v3132 = vmul.f32 %v3130, %v3131
    %v3133 = vadd.f32 %v3124, %v3132
    %3134 = vst [vmem:[%s9] sm:$0xff] %v3124
    %3135 = vst [vmem:[%s9 + $0x8] sm:$0xff] %v3130
    %3136 = vst [vmem:[%s9 + $0x10] sm:$0xff] %v3133
    // Predicated region
    $region62: #{actor_forward.1} parent=1 // pred_check
      _
    $region63: #{actor_forward.1} parent=1 // pred_check_branch
      %3138 = sbr.rel (0) target = $region65
    $region64: #{actor_forward.1} parent=1 // pred_region
      _
    $region65: #{actor_forward.1} parent=1 // pred_fallthru
      _
    // Predicated region
    $region66: #{actor_forward.1} parent=1 // pred_check
      _
    $region67: #{actor_forward.1} parent=1 // pred_check_branch
      %3140 = sbr.rel (0) target = $region69
    $region68: #{actor_forward.1} parent=1 // pred_region
      _
    $region69: #{actor_forward.1} parent=1 // pred_fallthru
      _
    %3141 = vsyncpa [#allocation3], 1
    %3142 = vsyncpa [#allocation5], 1
    %3143 = vsyncpa [#allocation8], 1
    %3144 = vsyncpa [#allocation11], 1

</llo_original>
